<compile_context>
chip_gen: v5e
topology: v5e:2x2
jax: 0.10.0
libtpu: 0.0.40
codegen_flags: <defaults>
</compile_context>

<pallas_src>
import functools

import jax
import jax.numpy as jnp
from jax.experimental import pallas as pl
from jax.experimental.pallas import tpu as pltpu

IN_FEATURES = 2048
OUT_FEATURES = 256
NUM_GRID = 20                 # number of grid intervals -> NUM_GRID + 1 knots
SPLINE_LO, SPLINE_HI = -1.0, 1.0
LEAKY_SLOPE = 0.01            # PyTorch nn.LeakyReLU default negative_slope
TB_MAX = 512                  # max batch-tile rows (fits default scoped VMEM
                              # on v5e/v6e/v7x with bf16 x double-buffering)


def dense_kernel(x_ref, w_ref, b_ref, c_ref, o_ref):
    """Fused Linear + ReLU + piecewise-linear spline + LeakyReLU.

    x_ref : [TB, 2048]           flattened input tile (bf16)
    w_ref : [2048, 256]          linear weight, transposed (bf16, resident)
    b_ref : [1, 256]             linear bias (f32, resident)
    c_ref : [NUM_GRID+1, 256]    spline coefficients, knot-major (f32, resident)
    o_ref : [TB, 256]            output tile (f32)
    """
    # ---- Linear (MXU, bf16 inputs, f32 accumulation) ----
    z = jnp.dot(x_ref[...], w_ref[...], preferred_element_type=jnp.float32)
    z = z + b_ref[...]

    # ---- ReLU ----
    z = jnp.maximum(z, 0.0)

    # ---- piecewise-linear spline over uniform grid on [lo, hi] ----
    h = (SPLINE_HI - SPLINE_LO) / NUM_GRID
    # z >= 0 after ReLU, so clip(z, -1, 1) ∈ [0, 1] and pos ∈ [NUM_GRID/2, NUM_GRID];
    # hat bases for k < NUM_GRID/2 are identically zero and are skipped.
    pos = (jnp.clip(z, SPLINE_LO, SPLINE_HI) - SPLINE_LO) * (1.0 / h)
    c = c_ref[...]                       # load coefficient table once: [21, 256]
    acc = jnp.zeros_like(z)
    for k in range(NUM_GRID // 2, NUM_GRID + 1):
        basis = jnp.maximum(0.0, 1.0 - jnp.abs(pos - float(k)))
        acc = acc + basis * c[k][None, :]

    # ---- LeakyReLU ----
    o_ref[...] = jnp.where(acc > 0.0, acc, LEAKY_SLOPE * acc).astype(o_ref.dtype)


@functools.partial(jax.jit, static_argnames=())
def dense_forward(x, w_bf16, b, coeffs):
    """x: [B, C, H, W] with C*H*W == 2048. Returns [B, 256] float32."""
    B = x.shape[0]
    x_flat = x.reshape(B, -1)                       # nn.Flatten() (NCHW row-major)
    assert x_flat.shape[1] == IN_FEATURES
    x_bf16 = x_flat.astype(jnp.bfloat16)            # halve HBM traffic, MXU-native

    # ---- batch tiling: round up to a sublane multiple (8), cap tile at TB_MAX ----
    if B <= TB_MAX:
        TB = max(8, ((B + 7) // 8) * 8)
        B_pad = TB
    else:
        TB = TB_MAX
        B_pad = ((B + TB - 1) // TB) * TB
    if B_pad != B:
        x_bf16 = jnp.pad(x_bf16, ((0, B_pad - B), (0, 0)))

    grid = (B_pad // TB,)

    cost = pl.CostEstimate(
        flops=2 * B_pad * IN_FEATURES * OUT_FEATURES,
        transcendentals=0,
        bytes_accessed=(x_bf16.size * 2                       # bf16 x stream
                        + IN_FEATURES * OUT_FEATURES * 2      # bf16 weights
                        + OUT_FEATURES * 4                    # f32 bias
                        + (NUM_GRID + 1) * OUT_FEATURES * 4   # f32 coeffs
                        + B_pad * OUT_FEATURES * 4))          # f32 output

    out = pl.pallas_call(
        dense_kernel,
        out_shape=jax.ShapeDtypeStruct((B_pad, OUT_FEATURES), jnp.float32),
        grid=grid,
        in_specs=[
            pl.BlockSpec((TB, IN_FEATURES), lambda i: (i, 0)),            # x tile
            pl.BlockSpec((IN_FEATURES, OUT_FEATURES), lambda i: (0, 0)),  # W (resident)
            pl.BlockSpec((1, OUT_FEATURES), lambda i: (0, 0)),            # bias
            pl.BlockSpec((NUM_GRID + 1, OUT_FEATURES), lambda i: (0, 0)), # coeffs
        ],
        out_specs=pl.BlockSpec((TB, OUT_FEATURES), lambda i: (i, 0)),
        compiler_params=pltpu.CompilerParams(
            dimension_semantics=("parallel",)),
        cost_estimate=cost,
    )(x_bf16, w_bf16, b.reshape(1, OUT_FEATURES), coeffs)

    return out[:B]


def init_params(key):
    """Deterministic synthetic parameter init (shapes from the module)."""
    k_w, k_b, k_c = jax.random.split(key, 3)
    # nn.Linear(2048, 256): weight [256, 2048], uniform(-1/sqrt(fan_in), +...)
    bound = 1.0 / jnp.sqrt(float(IN_FEATURES))
    w_torch = jax.random.uniform(
        k_w, (OUT_FEATURES, IN_FEATURES), jnp.float32, -bound, bound)
    b = jax.random.uniform(k_b, (OUT_FEATURES,), jnp.float32, -bound, bound)
    # Pre-transpose to [2048, 256] and pre-cast to bf16 for the MXU.
    w_bf16 = w_torch.T.astype(jnp.bfloat16)
    # spline_activation(grid=20, input_dim=512): coefficients [512, grid+1];
    # keep the first 256 rows (matching the 256 actual features), transposed
    # to knot-major [21, 256] for lane-contiguous access in the kernel.
    c_full = 0.1 * jax.random.normal(k_c, (512, NUM_GRID + 1), jnp.float32)
    coeffs = c_full[:OUT_FEATURES, :].T                       # [21, 256]
    return w_bf16, b, coeffs


if __name__ == "__main__":
    key = jax.random.PRNGKey(0)
    k_x, k_p = jax.random.split(key)

    # x: [B=2, C=8, H=16, W=16] -> flatten = 2048 features per sample.
    x = jax.random.normal(k_x, (2, 8, 16, 16), jnp.float32)
    w_bf16, b, coeffs = init_params(k_p)

    out = dense_forward(x, w_bf16, b, coeffs)
    out = jax.block_until_ready(out)
    assert out.shape == (2, OUT_FEATURES)
    assert jnp.all(jnp.isfinite(out))
    print("KERNEL_OK")
</pallas_src>

<mosaic_0001>
module attributes {stable_mosaic.version = 11 : i64} {
  func.func @dense_kernel(%arg0: i32, %arg1: memref<8x2048xbf16, #tpu.memory_space<vmem>>, %arg2: memref<2048x256xbf16, #tpu.memory_space<vmem>>, %arg3: memref<1x256xf32, #tpu.memory_space<vmem>>, %arg4: memref<21x256xf32, #tpu.memory_space<vmem>>, %arg5: memref<8x256xf32, #tpu.memory_space<vmem>>) attributes {dimension_semantics = [#tpu.dimension_semantics<parallel>], iteration_bounds = array<i64: 1>, scalar_prefetch = 0 : i64, scratch_operands = 0 : i64, tpu.core_type = #tpu.core_type<tc>, window_params = [{transform_indices = @transform_0, window_bounds = array<i64: 8, 2048>}, {pipeline_mode = #tpu.pipeline_mode<synchronous>, transform_indices = @transform_1, window_bounds = array<i64: 2048, 256>}, {pipeline_mode = #tpu.pipeline_mode<synchronous>, transform_indices = @transform_2, window_bounds = array<i64: 1, 256>}, {pipeline_mode = #tpu.pipeline_mode<synchronous>, transform_indices = @transform_3, window_bounds = array<i64: 21, 256>}, {transform_indices = @transform_4, window_bounds = array<i64: 8, 256>}]} {
    %c0 = arith.constant 0 : index
    %c0_0 = arith.constant 0 : index
    %0 = vector.load %arg1[%c0, %c0_0] : memref<8x2048xbf16, #tpu.memory_space<vmem>>, vector<8x2048xbf16>
    %c0_1 = arith.constant 0 : index
    %c0_2 = arith.constant 0 : index
    %1 = vector.load %arg2[%c0_1, %c0_2] : memref<2048x256xbf16, #tpu.memory_space<vmem>>, vector<2048x256xbf16>
    %cst = arith.constant dense<0.000000e+00> : vector<8x256xf32>
    %2 = tpu.matmul %0, %1, %cst {dimension_numbers = #tpu.dot_dimension_numbers<[1], [0], [0], [1], [0, 0, 1, 1], [], []>} : vector<8x2048xbf16>, vector<2048x256xbf16>, vector<8x256xf32> -> vector<8x256xf32>
    %c0_3 = arith.constant 0 : index
    %c0_4 = arith.constant 0 : index
    %3 = vector.load %arg3[%c0_3, %c0_4] : memref<1x256xf32, #tpu.memory_space<vmem>>, vector<1x256xf32>
    %4 = vector.broadcast %3 : vector<1x256xf32> to vector<8x256xf32>
    %5 = arith.addf %2, %4 : vector<8x256xf32>
    %cst_5 = arith.constant 0.000000e+00 : f32
    %6 = vector.broadcast %cst_5 : f32 to vector<8x256xf32>
    %7 = arith.maximumf %5, %6 : vector<8x256xf32>
    %cst_6 = arith.constant -1.000000e+00 : f32
    %cst_7 = arith.constant 1.000000e+00 : f32
    %8 = vector.broadcast %cst_6 : f32 to vector<8x256xf32>
    %9 = arith.maximumf %8, %7 : vector<8x256xf32>
    %10 = vector.broadcast %cst_7 : f32 to vector<8x256xf32>
    %11 = arith.minimumf %10, %9 : vector<8x256xf32>
    %cst_8 = arith.constant -1.000000e+00 : f32
    %12 = vector.broadcast %cst_8 : f32 to vector<8x256xf32>
    %13 = arith.subf %11, %12 : vector<8x256xf32>
    %cst_9 = arith.constant 1.000000e+01 : f32
    %14 = vector.broadcast %cst_9 : f32 to vector<8x256xf32>
    %15 = arith.mulf %13, %14 : vector<8x256xf32>
    %c0_10 = arith.constant 0 : index
    %c0_11 = arith.constant 0 : index
    %16 = vector.load %arg4[%c0_10, %c0_11] : memref<21x256xf32, #tpu.memory_space<vmem>>, vector<21x256xf32>
    %cst_12 = arith.constant 0.000000e+00 : f32
    %17 = vector.broadcast %cst_12 : f32 to vector<8x256xf32>
    %cst_13 = arith.constant 1.000000e+01 : f32
    %18 = vector.broadcast %cst_13 : f32 to vector<8x256xf32>
    %19 = arith.subf %15, %18 : vector<8x256xf32>
    %20 = math.absf %19 : vector<8x256xf32>
    %cst_14 = arith.constant 1.000000e+00 : f32
    %21 = vector.broadcast %cst_14 : f32 to vector<8x256xf32>
    %22 = arith.subf %21, %20 : vector<8x256xf32>
    %cst_15 = arith.constant 0.000000e+00 : f32
    %23 = vector.broadcast %cst_15 : f32 to vector<8x256xf32>
    %24 = arith.maximumf %23, %22 : vector<8x256xf32>
    %25 = vector.extract_strided_slice %16 {offsets = [10, 0], sizes = [1, 256], strides = [1, 1]} : vector<21x256xf32> to vector<1x256xf32>
    %26 = vector.shape_cast %25 : vector<1x256xf32> to vector<256xf32>
    %27 = vector.shape_cast %26 : vector<256xf32> to vector<1x256xf32>
    %28 = vector.broadcast %27 : vector<1x256xf32> to vector<8x256xf32>
    %29 = arith.mulf %24, %28 : vector<8x256xf32>
    %30 = arith.addf %17, %29 : vector<8x256xf32>
    %cst_16 = arith.constant 1.100000e+01 : f32
    %31 = vector.broadcast %cst_16 : f32 to vector<8x256xf32>
    %32 = arith.subf %15, %31 : vector<8x256xf32>
    %33 = math.absf %32 : vector<8x256xf32>
    %cst_17 = arith.constant 1.000000e+00 : f32
    %34 = vector.broadcast %cst_17 : f32 to vector<8x256xf32>
    %35 = arith.subf %34, %33 : vector<8x256xf32>
    %cst_18 = arith.constant 0.000000e+00 : f32
    %36 = vector.broadcast %cst_18 : f32 to vector<8x256xf32>
    %37 = arith.maximumf %36, %35 : vector<8x256xf32>
    %38 = vector.extract_strided_slice %16 {offsets = [11, 0], sizes = [1, 256], strides = [1, 1]} : vector<21x256xf32> to vector<1x256xf32>
    %39 = vector.shape_cast %38 : vector<1x256xf32> to vector<256xf32>
    %40 = vector.shape_cast %39 : vector<256xf32> to vector<1x256xf32>
    %41 = vector.broadcast %40 : vector<1x256xf32> to vector<8x256xf32>
    %42 = arith.mulf %37, %41 : vector<8x256xf32>
    %43 = arith.addf %30, %42 : vector<8x256xf32>
    %cst_19 = arith.constant 1.200000e+01 : f32
    %44 = vector.broadcast %cst_19 : f32 to vector<8x256xf32>
    %45 = arith.subf %15, %44 : vector<8x256xf32>
    %46 = math.absf %45 : vector<8x256xf32>
    %cst_20 = arith.constant 1.000000e+00 : f32
    %47 = vector.broadcast %cst_20 : f32 to vector<8x256xf32>
    %48 = arith.subf %47, %46 : vector<8x256xf32>
    %cst_21 = arith.constant 0.000000e+00 : f32
    %49 = vector.broadcast %cst_21 : f32 to vector<8x256xf32>
    %50 = arith.maximumf %49, %48 : vector<8x256xf32>
    %51 = vector.extract_strided_slice %16 {offsets = [12, 0], sizes = [1, 256], strides = [1, 1]} : vector<21x256xf32> to vector<1x256xf32>
    %52 = vector.shape_cast %51 : vector<1x256xf32> to vector<256xf32>
    %53 = vector.shape_cast %52 : vector<256xf32> to vector<1x256xf32>
    %54 = vector.broadcast %53 : vector<1x256xf32> to vector<8x256xf32>
    %55 = arith.mulf %50, %54 : vector<8x256xf32>
    %56 = arith.addf %43, %55 : vector<8x256xf32>
    %cst_22 = arith.constant 1.300000e+01 : f32
    %57 = vector.broadcast %cst_22 : f32 to vector<8x256xf32>
    %58 = arith.subf %15, %57 : vector<8x256xf32>
    %59 = math.absf %58 : vector<8x256xf32>
    %cst_23 = arith.constant 1.000000e+00 : f32
    %60 = vector.broadcast %cst_23 : f32 to vector<8x256xf32>
    %61 = arith.subf %60, %59 : vector<8x256xf32>
    %cst_24 = arith.constant 0.000000e+00 : f32
    %62 = vector.broadcast %cst_24 : f32 to vector<8x256xf32>
    %63 = arith.maximumf %62, %61 : vector<8x256xf32>
    %64 = vector.extract_strided_slice %16 {offsets = [13, 0], sizes = [1, 256], strides = [1, 1]} : vector<21x256xf32> to vector<1x256xf32>
    %65 = vector.shape_cast %64 : vector<1x256xf32> to vector<256xf32>
    %66 = vector.shape_cast %65 : vector<256xf32> to vector<1x256xf32>
    %67 = vector.broadcast %66 : vector<1x256xf32> to vector<8x256xf32>
    %68 = arith.mulf %63, %67 : vector<8x256xf32>
    %69 = arith.addf %56, %68 : vector<8x256xf32>
    %cst_25 = arith.constant 1.400000e+01 : f32
    %70 = vector.broadcast %cst_25 : f32 to vector<8x256xf32>
    %71 = arith.subf %15, %70 : vector<8x256xf32>
    %72 = math.absf %71 : vector<8x256xf32>
    %cst_26 = arith.constant 1.000000e+00 : f32
    %73 = vector.broadcast %cst_26 : f32 to vector<8x256xf32>
    %74 = arith.subf %73, %72 : vector<8x256xf32>
    %cst_27 = arith.constant 0.000000e+00 : f32
    %75 = vector.broadcast %cst_27 : f32 to vector<8x256xf32>
    %76 = arith.maximumf %75, %74 : vector<8x256xf32>
    %77 = vector.extract_strided_slice %16 {offsets = [14, 0], sizes = [1, 256], strides = [1, 1]} : vector<21x256xf32> to vector<1x256xf32>
    %78 = vector.shape_cast %77 : vector<1x256xf32> to vector<256xf32>
    %79 = vector.shape_cast %78 : vector<256xf32> to vector<1x256xf32>
    %80 = vector.broadcast %79 : vector<1x256xf32> to vector<8x256xf32>
    %81 = arith.mulf %76, %80 : vector<8x256xf32>
    %82 = arith.addf %69, %81 : vector<8x256xf32>
    %cst_28 = arith.constant 1.500000e+01 : f32
    %83 = vector.broadcast %cst_28 : f32 to vector<8x256xf32>
    %84 = arith.subf %15, %83 : vector<8x256xf32>
    %85 = math.absf %84 : vector<8x256xf32>
    %cst_29 = arith.constant 1.000000e+00 : f32
    %86 = vector.broadcast %cst_29 : f32 to vector<8x256xf32>
    %87 = arith.subf %86, %85 : vector<8x256xf32>
    %cst_30 = arith.constant 0.000000e+00 : f32
    %88 = vector.broadcast %cst_30 : f32 to vector<8x256xf32>
    %89 = arith.maximumf %88, %87 : vector<8x256xf32>
    %90 = vector.extract_strided_slice %16 {offsets = [15, 0], sizes = [1, 256], strides = [1, 1]} : vector<21x256xf32> to vector<1x256xf32>
    %91 = vector.shape_cast %90 : vector<1x256xf32> to vector<256xf32>
    %92 = vector.shape_cast %91 : vector<256xf32> to vector<1x256xf32>
    %93 = vector.broadcast %92 : vector<1x256xf32> to vector<8x256xf32>
    %94 = arith.mulf %89, %93 : vector<8x256xf32>
    %95 = arith.addf %82, %94 : vector<8x256xf32>
    %cst_31 = arith.constant 1.600000e+01 : f32
    %96 = vector.broadcast %cst_31 : f32 to vector<8x256xf32>
    %97 = arith.subf %15, %96 : vector<8x256xf32>
    %98 = math.absf %97 : vector<8x256xf32>
    %cst_32 = arith.constant 1.000000e+00 : f32
    %99 = vector.broadcast %cst_32 : f32 to vector<8x256xf32>
    %100 = arith.subf %99, %98 : vector<8x256xf32>
    %cst_33 = arith.constant 0.000000e+00 : f32
    %101 = vector.broadcast %cst_33 : f32 to vector<8x256xf32>
    %102 = arith.maximumf %101, %100 : vector<8x256xf32>
    %103 = vector.extract_strided_slice %16 {offsets = [16, 0], sizes = [1, 256], strides = [1, 1]} : vector<21x256xf32> to vector<1x256xf32>
    %104 = vector.shape_cast %103 : vector<1x256xf32> to vector<256xf32>
    %105 = vector.shape_cast %104 : vector<256xf32> to vector<1x256xf32>
    %106 = vector.broadcast %105 : vector<1x256xf32> to vector<8x256xf32>
    %107 = arith.mulf %102, %106 : vector<8x256xf32>
    %108 = arith.addf %95, %107 : vector<8x256xf32>
    %cst_34 = arith.constant 1.700000e+01 : f32
    %109 = vector.broadcast %cst_34 : f32 to vector<8x256xf32>
    %110 = arith.subf %15, %109 : vector<8x256xf32>
    %111 = math.absf %110 : vector<8x256xf32>
    %cst_35 = arith.constant 1.000000e+00 : f32
    %112 = vector.broadcast %cst_35 : f32 to vector<8x256xf32>
    %113 = arith.subf %112, %111 : vector<8x256xf32>
    %cst_36 = arith.constant 0.000000e+00 : f32
    %114 = vector.broadcast %cst_36 : f32 to vector<8x256xf32>
    %115 = arith.maximumf %114, %113 : vector<8x256xf32>
    %116 = vector.extract_strided_slice %16 {offsets = [17, 0], sizes = [1, 256], strides = [1, 1]} : vector<21x256xf32> to vector<1x256xf32>
    %117 = vector.shape_cast %116 : vector<1x256xf32> to vector<256xf32>
    %118 = vector.shape_cast %117 : vector<256xf32> to vector<1x256xf32>
    %119 = vector.broadcast %118 : vector<1x256xf32> to vector<8x256xf32>
    %120 = arith.mulf %115, %119 : vector<8x256xf32>
    %121 = arith.addf %108, %120 : vector<8x256xf32>
    %cst_37 = arith.constant 1.800000e+01 : f32
    %122 = vector.broadcast %cst_37 : f32 to vector<8x256xf32>
    %123 = arith.subf %15, %122 : vector<8x256xf32>
    %124 = math.absf %123 : vector<8x256xf32>
    %cst_38 = arith.constant 1.000000e+00 : f32
    %125 = vector.broadcast %cst_38 : f32 to vector<8x256xf32>
    %126 = arith.subf %125, %124 : vector<8x256xf32>
    %cst_39 = arith.constant 0.000000e+00 : f32
    %127 = vector.broadcast %cst_39 : f32 to vector<8x256xf32>
    %128 = arith.maximumf %127, %126 : vector<8x256xf32>
    %129 = vector.extract_strided_slice %16 {offsets = [18, 0], sizes = [1, 256], strides = [1, 1]} : vector<21x256xf32> to vector<1x256xf32>
    %130 = vector.shape_cast %129 : vector<1x256xf32> to vector<256xf32>
    %131 = vector.shape_cast %130 : vector<256xf32> to vector<1x256xf32>
    %132 = vector.broadcast %131 : vector<1x256xf32> to vector<8x256xf32>
    %133 = arith.mulf %128, %132 : vector<8x256xf32>
    %134 = arith.addf %121, %133 : vector<8x256xf32>
    %cst_40 = arith.constant 1.900000e+01 : f32
    %135 = vector.broadcast %cst_40 : f32 to vector<8x256xf32>
    %136 = arith.subf %15, %135 : vector<8x256xf32>
    %137 = math.absf %136 : vector<8x256xf32>
    %cst_41 = arith.constant 1.000000e+00 : f32
    %138 = vector.broadcast %cst_41 : f32 to vector<8x256xf32>
    %139 = arith.subf %138, %137 : vector<8x256xf32>
    %cst_42 = arith.constant 0.000000e+00 : f32
    %140 = vector.broadcast %cst_42 : f32 to vector<8x256xf32>
    %141 = arith.maximumf %140, %139 : vector<8x256xf32>
    %142 = vector.extract_strided_slice %16 {offsets = [19, 0], sizes = [1, 256], strides = [1, 1]} : vector<21x256xf32> to vector<1x256xf32>
    %143 = vector.shape_cast %142 : vector<1x256xf32> to vector<256xf32>
    %144 = vector.shape_cast %143 : vector<256xf32> to vector<1x256xf32>
    %145 = vector.broadcast %144 : vector<1x256xf32> to vector<8x256xf32>
    %146 = arith.mulf %141, %145 : vector<8x256xf32>
    %147 = arith.addf %134, %146 : vector<8x256xf32>
    %cst_43 = arith.constant 2.000000e+01 : f32
    %148 = vector.broadcast %cst_43 : f32 to vector<8x256xf32>
    %149 = arith.subf %15, %148 : vector<8x256xf32>
    %150 = math.absf %149 : vector<8x256xf32>
    %cst_44 = arith.constant 1.000000e+00 : f32
    %151 = vector.broadcast %cst_44 : f32 to vector<8x256xf32>
    %152 = arith.subf %151, %150 : vector<8x256xf32>
    %cst_45 = arith.constant 0.000000e+00 : f32
    %153 = vector.broadcast %cst_45 : f32 to vector<8x256xf32>
    %154 = arith.maximumf %153, %152 : vector<8x256xf32>
    %155 = vector.extract_strided_slice %16 {offsets = [20, 0], sizes = [1, 256], strides = [1, 1]} : vector<21x256xf32> to vector<1x256xf32>
    %156 = vector.shape_cast %155 : vector<1x256xf32> to vector<256xf32>
    %157 = vector.shape_cast %156 : vector<256xf32> to vector<1x256xf32>
    %158 = vector.broadcast %157 : vector<1x256xf32> to vector<8x256xf32>
    %159 = arith.mulf %154, %158 : vector<8x256xf32>
    %160 = arith.addf %147, %159 : vector<8x256xf32>
    %cst_46 = arith.constant 0.000000e+00 : f32
    %161 = vector.broadcast %cst_46 : f32 to vector<8x256xf32>
    %162 = arith.cmpf ogt, %160, %161 : vector<8x256xf32>
    %cst_47 = arith.constant 0.00999999977 : f32
    %163 = vector.broadcast %cst_47 : f32 to vector<8x256xf32>
    %164 = arith.mulf %163, %160 : vector<8x256xf32>
    %165 = arith.select %162, %160, %164 : vector<8x256xi1>, vector<8x256xf32>
    %c0_48 = arith.constant 0 : index
    %c0_49 = arith.constant 0 : index
    %166 = vector.load %arg5[%c0_48, %c0_49] : memref<8x256xf32, #tpu.memory_space<vmem>>, vector<8x256xf32>
    tpu.vector_store %arg5[%c0_48, %c0_49], %165 {strides = array<i32>} : memref<8x256xf32, #tpu.memory_space<vmem>>, vector<8x256xf32>,
    return
  }
  func.func @transform_0(%arg0: i32) -> (i32, i32) {
    %c0_i32 = arith.constant 0 : i32
    %c0_i32_0 = arith.constant 0 : i32
    return %arg0, %c0_i32 : i32, i32
  }
  func.func @transform_1(%arg0: i32) -> (i32, i32) {
    %c0_i32 = arith.constant 0 : i32
    %c0_i32_0 = arith.constant 0 : i32
    %c0_i32_1 = arith.constant 0 : i32
    return %c0_i32, %c0_i32_0 : i32, i32
  }
  func.func @transform_2(%arg0: i32) -> (i32, i32) {
    %c0_i32 = arith.constant 0 : i32
    %c0_i32_0 = arith.constant 0 : i32
    %c0_i32_1 = arith.constant 0 : i32
    return %c0_i32, %c0_i32_0 : i32, i32
  }
  func.func @transform_3(%arg0: i32) -> (i32, i32) {
    %c0_i32 = arith.constant 0 : i32
    %c0_i32_0 = arith.constant 0 : i32
    %c0_i32_1 = arith.constant 0 : i32
    return %c0_i32, %c0_i32_0 : i32, i32
  }
  func.func @transform_4(%arg0: i32) -> (i32, i32) {
    %c0_i32 = arith.constant 0 : i32
    %c0_i32_0 = arith.constant 0 : i32
    return %arg0, %c0_i32 : i32, i32
  }
}

</mosaic_0001>

<llo_original>
// kernel: dense_forward.1
$region0: #{dense_forward.1}
  #allocation0 [shape = 'u32[]', space=smem, size = 0x4, offset = 0x4, fixed_abs, tag = 'smem constant byte address 0x4 - core index']
  #allocation1 [shape = 'u32[72,128]{1,0:T(1,128)}', space=vmem, size = 0x9000, scoped, tag = 'internal scratch']
  %s0 = inlined_call_operand.vmem [shape: bf16[8,2048], index: 0, kind: input, shape index: {}]
  %s1 = inlined_call_operand.hbm [shape: bf16[2048,256], index: 1, kind: input, shape index: {}]
  %s2 = inlined_call_operand.vmem [shape: f32[1,256], index: 2, kind: input, shape index: {}]
  %s3 = inlined_call_operand.vmem [shape: f32[21,256], index: 3, kind: input, shape index: {}]
  %s4 = inlined_call_operand.vmem [shape: f32[8,256], index: 4, kind: output, shape index: {}]
  %s5 = sld [smem:[#allocation0]]
  $region30: #{dense_forward.1} parent=0
    _
  %s7 = ssub.s32 1, %s5
  %s8 = scalar_select 0, %s7, %s5
  $region1: #{dense_forward.1} parent=0
    #allocation2 [shape = 'u8[1048576]{0}', space=vmem, size = 0x100000, scoped, tag = 'input window, operand 1, single buffered']
    #allocation3 [shape = 's32[1]{0}', space=sflag, size = 0x4, scoped, tag = 'scoped memory for dense_forward.1']
    %9 = vsyncpa [#allocation3], 0
    // Predicated region
    $region2: #{dense_forward.1} parent=1 // pred_check
      _
    $region3: #{dense_forward.1} parent=1 // pred_check_branch
      %11 = sbr.rel (0) target = $region5
    $region4: #{dense_forward.1} parent=1 // pred_region
      _
    $region5: #{dense_forward.1} parent=1 // pred_fallthru
      _
    // Predicated region
    $region6: #{dense_forward.1} parent=1 // pred_check
      _
    $region7: #{dense_forward.1} parent=1 // pred_check_branch
      %13 = sbr.rel (0) target = $region9
    $region8: #{dense_forward.1} parent=1 // pred_region
      %15 = vsyncadd [#allocation3], 0
      %s16 = sshll.u32 %s1, 4
      %s17 = int_to_ptr.hbm [resolvable:$true] %s16
      %s18 = sshll.u32 [#allocation2], 4
      %s19 = int_to_ptr.vmem [resolvable:$true] %s18
      %24 = dma.hbm_to_vmem [thread:$0]  %s17, 32768, %s19, [#allocation3], 128, 128, 8
    $region9: #{dense_forward.1} parent=1 // pred_fallthru
      _
    // Predicated region
    $region10: #{dense_forward.1} parent=1 // pred_check
      _
    $region11: #{dense_forward.1} parent=1 // pred_check_branch
      %26 = sbr.rel (0) target = $region13
    $region12: #{dense_forward.1} parent=1 // pred_region
      _
    $region13: #{dense_forward.1} parent=1 // pred_fallthru
      _
    // Predicated region
    $region14: #{dense_forward.1} parent=1 // pred_check
      _
    $region15: #{dense_forward.1} parent=1 // pred_check_branch
      %28 = sbr.rel (0) target = $region17
    $region16: #{dense_forward.1} parent=1 // pred_region
      _
    $region17: #{dense_forward.1} parent=1 // pred_fallthru
      _
    // Predicated region
    $region18: #{dense_forward.1} parent=1 // pred_check
      _
    $region19: #{dense_forward.1} parent=1 // pred_check_branch
      %30 = sbr.rel (0) target = $region21
    $region20: #{dense_forward.1} parent=1 // pred_region
      %32 = dma.done [#allocation3], 32768
    $region21: #{dense_forward.1} parent=1 // pred_fallthru
      _
    %v33 = vld [vmem:[%s0] sm:$0xff]
    %v34 = vld [vmem:[%s0 + $0x8] sm:$0xff]
    %v35 = vld [vmem:[%s0 + $0x10] sm:$0xff]
    %v36 = vld [vmem:[%s0 + $0x18] sm:$0xff]
    %v37 = vld [vmem:[%s0 + $0x20] sm:$0xff]
    %v38 = vld [vmem:[%s0 + $0x28] sm:$0xff]
    %v39 = vld [vmem:[%s0 + $0x30] sm:$0xff]
    %v40 = vld [vmem:[%s0 + $0x38] sm:$0xff]
    %v41 = vld [vmem:[#allocation2] sm:$0xff]
    %v42 = vld [vmem:[#allocation2 + $0x8] sm:$0xff]
    %v43 = vld [vmem:[#allocation2 + $0x10] sm:$0xff]
    %v44 = vld [vmem:[#allocation2 + $0x18] sm:$0xff]
    %v45 = vld [vmem:[#allocation2 + $0x20] sm:$0xff]
    %v46 = vld [vmem:[#allocation2 + $0x28] sm:$0xff]
    %v47 = vld [vmem:[#allocation2 + $0x30] sm:$0xff]
    %v48 = vld [vmem:[#allocation2 + $0x38] sm:$0xff]
    %v49 = vld [vmem:[#allocation2 + $0x40] sm:$0xff]
    %v50 = vld [vmem:[#allocation2 + $0x48] sm:$0xff]
    %v51 = vld [vmem:[#allocation2 + $0x50] sm:$0xff]
    %v52 = vld [vmem:[#allocation2 + $0x58] sm:$0xff]
    %v53 = vld [vmem:[#allocation2 + $0x60] sm:$0xff]
    %v54 = vld [vmem:[#allocation2 + $0x68] sm:$0xff]
    %v55 = vld [vmem:[#allocation2 + $0x70] sm:$0xff]
    %v56 = vld [vmem:[#allocation2 + $0x78] sm:$0xff]
    %v57 = vld [vmem:[#allocation2 + $0x80] sm:$0xff]
    %v58 = vld [vmem:[#allocation2 + $0x88] sm:$0xff]
    %v59 = vld [vmem:[#allocation2 + $0x90] sm:$0xff]
    %v60 = vld [vmem:[#allocation2 + $0x98] sm:$0xff]
    %v61 = vld [vmem:[#allocation2 + $0xa0] sm:$0xff]
    %v62 = vld [vmem:[#allocation2 + $0xa8] sm:$0xff]
    %v63 = vld [vmem:[#allocation2 + $0xb0] sm:$0xff]
    %v64 = vld [vmem:[#allocation2 + $0xb8] sm:$0xff]
    %v65 = vld [vmem:[#allocation2 + $0xc0] sm:$0xff]
    %v66 = vld [vmem:[#allocation2 + $0xc8] sm:$0xff]
    %v67 = vld [vmem:[#allocation2 + $0xd0] sm:$0xff]
    %v68 = vld [vmem:[#allocation2 + $0xd8] sm:$0xff]
    %v69 = vld [vmem:[#allocation2 + $0xe0] sm:$0xff]
    %v70 = vld [vmem:[#allocation2 + $0xe8] sm:$0xff]
    %v71 = vld [vmem:[#allocation2 + $0xf0] sm:$0xff]
    %v72 = vld [vmem:[#allocation2 + $0xf8] sm:$0xff]
    %v73 = vld [vmem:[#allocation2 + $0x100] sm:$0xff]
    %v74 = vld [vmem:[#allocation2 + $0x108] sm:$0xff]
    %v75 = vld [vmem:[#allocation2 + $0x110] sm:$0xff]
    %v76 = vld [vmem:[#allocation2 + $0x118] sm:$0xff]
    %v77 = vld [vmem:[#allocation2 + $0x120] sm:$0xff]
    %v78 = vld [vmem:[#allocation2 + $0x128] sm:$0xff]
    %v79 = vld [vmem:[#allocation2 + $0x130] sm:$0xff]
    %v80 = vld [vmem:[#allocation2 + $0x138] sm:$0xff]
    %v81 = vld [vmem:[#allocation2 + $0x140] sm:$0xff]
    %v82 = vld [vmem:[#allocation2 + $0x148] sm:$0xff]
    %v83 = vld [vmem:[#allocation2 + $0x150] sm:$0xff]
    %v84 = vld [vmem:[#allocation2 + $0x158] sm:$0xff]
    %v85 = vld [vmem:[#allocation2 + $0x160] sm:$0xff]
    %v86 = vld [vmem:[#allocation2 + $0x168] sm:$0xff]
    %v87 = vld [vmem:[#allocation2 + $0x170] sm:$0xff]
    %v88 = vld [vmem:[#allocation2 + $0x178] sm:$0xff]
    %v89 = vld [vmem:[#allocation2 + $0x180] sm:$0xff]
    %v90 = vld [vmem:[#allocation2 + $0x188] sm:$0xff]
    %v91 = vld [vmem:[#allocation2 + $0x190] sm:$0xff]
    %v92 = vld [vmem:[#allocation2 + $0x198] sm:$0xff]
    %v93 = vld [vmem:[#allocation2 + $0x1a0] sm:$0xff]
    %v94 = vld [vmem:[#allocation2 + $0x1a8] sm:$0xff]
    %v95 = vld [vmem:[#allocation2 + $0x1b0] sm:$0xff]
    %v96 = vld [vmem:[#allocation2 + $0x1b8] sm:$0xff]
    %v97 = vld [vmem:[#allocation2 + $0x1c0] sm:$0xff]
    %v98 = vld [vmem:[#allocation2 + $0x1c8] sm:$0xff]
    %v99 = vld [vmem:[#allocation2 + $0x1d0] sm:$0xff]
    %v100 = vld [vmem:[#allocation2 + $0x1d8] sm:$0xff]
    %v101 = vld [vmem:[#allocation2 + $0x1e0] sm:$0xff]
    %v102 = vld [vmem:[#allocation2 + $0x1e8] sm:$0xff]
    %v103 = vld [vmem:[#allocation2 + $0x1f0] sm:$0xff]
    %v104 = vld [vmem:[#allocation2 + $0x1f8] sm:$0xff]
    %v105 = vld [vmem:[#allocation2 + $0x200] sm:$0xff]
    %v106 = vld [vmem:[#allocation2 + $0x208] sm:$0xff]
    %v107 = vld [vmem:[#allocation2 + $0x210] sm:$0xff]
    %v108 = vld [vmem:[#allocation2 + $0x218] sm:$0xff]
    %v109 = vld [vmem:[#allocation2 + $0x220] sm:$0xff]
    %v110 = vld [vmem:[#allocation2 + $0x228] sm:$0xff]
    %v111 = vld [vmem:[#allocation2 + $0x230] sm:$0xff]
    %v112 = vld [vmem:[#allocation2 + $0x238] sm:$0xff]
    %v113 = vld [vmem:[#allocation2 + $0x240] sm:$0xff]
    %v114 = vld [vmem:[#allocation2 + $0x248] sm:$0xff]
    %v115 = vld [vmem:[#allocation2 + $0x250] sm:$0xff]
    %v116 = vld [vmem:[#allocation2 + $0x258] sm:$0xff]
    %v117 = vld [vmem:[#allocation2 + $0x260] sm:$0xff]
    %v118 = vld [vmem:[#allocation2 + $0x268] sm:$0xff]
    %v119 = vld [vmem:[#allocation2 + $0x270] sm:$0xff]
    %v120 = vld [vmem:[#allocation2 + $0x278] sm:$0xff]
    %v121 = vld [vmem:[#allocation2 + $0x280] sm:$0xff]
    %v122 = vld [vmem:[#allocation2 + $0x288] sm:$0xff]
    %v123 = vld [vmem:[#allocation2 + $0x290] sm:$0xff]
    %v124 = vld [vmem:[#allocation2 + $0x298] sm:$0xff]
    %v125 = vld [vmem:[#allocation2 + $0x2a0] sm:$0xff]
    %v126 = vld [vmem:[#allocation2 + $0x2a8] sm:$0xff]
    %v127 = vld [vmem:[#allocation2 + $0x2b0] sm:$0xff]
    %v128 = vld [vmem:[#allocation2 + $0x2b8] sm:$0xff]
    %v129 = vld [vmem:[#allocation2 + $0x2c0] sm:$0xff]
    %v130 = vld [vmem:[#allocation2 + $0x2c8] sm:$0xff]
    %v131 = vld [vmem:[#allocation2 + $0x2d0] sm:$0xff]
    %v132 = vld [vmem:[#allocation2 + $0x2d8] sm:$0xff]
    %v133 = vld [vmem:[#allocation2 + $0x2e0] sm:$0xff]
    %v134 = vld [vmem:[#allocation2 + $0x2e8] sm:$0xff]
    %v135 = vld [vmem:[#allocation2 + $0x2f0] sm:$0xff]
    %v136 = vld [vmem:[#allocation2 + $0x2f8] sm:$0xff]
    %v137 = vld [vmem:[#allocation2 + $0x300] sm:$0xff]
    %v138 = vld [vmem:[#allocation2 + $0x308] sm:$0xff]
    %v139 = vld [vmem:[#allocation2 + $0x310] sm:$0xff]
    %v140 = vld [vmem:[#allocation2 + $0x318] sm:$0xff]
    %v141 = vld [vmem:[#allocation2 + $0x320] sm:$0xff]
    %v142 = vld [vmem:[#allocation2 + $0x328] sm:$0xff]
    %v143 = vld [vmem:[#allocation2 + $0x330] sm:$0xff]
    %v144 = vld [vmem:[#allocation2 + $0x338] sm:$0xff]
    %v145 = vld [vmem:[#allocation2 + $0x340] sm:$0xff]
    %v146 = vld [vmem:[#allocation2 + $0x348] sm:$0xff]
    %v147 = vld [vmem:[#allocation2 + $0x350] sm:$0xff]
    %v148 = vld [vmem:[#allocation2 + $0x358] sm:$0xff]
    %v149 = vld [vmem:[#allocation2 + $0x360] sm:$0xff]
    %v150 = vld [vmem:[#allocation2 + $0x368] sm:$0xff]
    %v151 = vld [vmem:[#allocation2 + $0x370] sm:$0xff]
    %v152 = vld [vmem:[#allocation2 + $0x378] sm:$0xff]
    %v153 = vld [vmem:[#allocation2 + $0x380] sm:$0xff]
    %v154 = vld [vmem:[#allocation2 + $0x388] sm:$0xff]
    %v155 = vld [vmem:[#allocation2 + $0x390] sm:$0xff]
    %v156 = vld [vmem:[#allocation2 + $0x398] sm:$0xff]
    %v157 = vld [vmem:[#allocation2 + $0x3a0] sm:$0xff]
    %v158 = vld [vmem:[#allocation2 + $0x3a8] sm:$0xff]
    %v159 = vld [vmem:[#allocation2 + $0x3b0] sm:$0xff]
    %v160 = vld [vmem:[#allocation2 + $0x3b8] sm:$0xff]
    %v161 = vld [vmem:[#allocation2 + $0x3c0] sm:$0xff]
    %v162 = vld [vmem:[#allocation2 + $0x3c8] sm:$0xff]
    %v163 = vld [vmem:[#allocation2 + $0x3d0] sm:$0xff]
    %v164 = vld [vmem:[#allocation2 + $0x3d8] sm:$0xff]
    %v165 = vld [vmem:[#allocation2 + $0x3e0] sm:$0xff]
    %v166 = vld [vmem:[#allocation2 + $0x3e8] sm:$0xff]
    %v167 = vld [vmem:[#allocation2 + $0x3f0] sm:$0xff]
    %v168 = vld [vmem:[#allocation2 + $0x3f8] sm:$0xff]
    %v169 = vld [vmem:[#allocation2 + $0x400] sm:$0xff]
    %v170 = vld [vmem:[#allocation2 + $0x408] sm:$0xff]
    %v171 = vld [vmem:[#allocation2 + $0x410] sm:$0xff]
    %v172 = vld [vmem:[#allocation2 + $0x418] sm:$0xff]
    %v173 = vld [vmem:[#allocation2 + $0x420] sm:$0xff]
    %v174 = vld [vmem:[#allocation2 + $0x428] sm:$0xff]
    %v175 = vld [vmem:[#allocation2 + $0x430] sm:$0xff]
    %v176 = vld [vmem:[#allocation2 + $0x438] sm:$0xff]
    %v177 = vld [vmem:[#allocation2 + $0x440] sm:$0xff]
    %v178 = vld [vmem:[#allocation2 + $0x448] sm:$0xff]
    %v179 = vld [vmem:[#allocation2 + $0x450] sm:$0xff]
    %v180 = vld [vmem:[#allocation2 + $0x458] sm:$0xff]
    %v181 = vld [vmem:[#allocation2 + $0x460] sm:$0xff]
    %v182 = vld [vmem:[#allocation2 + $0x468] sm:$0xff]
    %v183 = vld [vmem:[#allocation2 + $0x470] sm:$0xff]
    %v184 = vld [vmem:[#allocation2 + $0x478] sm:$0xff]
    %v185 = vld [vmem:[#allocation2 + $0x480] sm:$0xff]
    %v186 = vld [vmem:[#allocation2 + $0x488] sm:$0xff]
    %v187 = vld [vmem:[#allocation2 + $0x490] sm:$0xff]
    %v188 = vld [vmem:[#allocation2 + $0x498] sm:$0xff]
    %v189 = vld [vmem:[#allocation2 + $0x4a0] sm:$0xff]
    %v190 = vld [vmem:[#allocation2 + $0x4a8] sm:$0xff]
    %v191 = vld [vmem:[#allocation2 + $0x4b0] sm:$0xff]
    %v192 = vld [vmem:[#allocation2 + $0x4b8] sm:$0xff]
    %v193 = vld [vmem:[#allocation2 + $0x4c0] sm:$0xff]
    %v194 = vld [vmem:[#allocation2 + $0x4c8] sm:$0xff]
    %v195 = vld [vmem:[#allocation2 + $0x4d0] sm:$0xff]
    %v196 = vld [vmem:[#allocation2 + $0x4d8] sm:$0xff]
    %v197 = vld [vmem:[#allocation2 + $0x4e0] sm:$0xff]
    %v198 = vld [vmem:[#allocation2 + $0x4e8] sm:$0xff]
    %v199 = vld [vmem:[#allocation2 + $0x4f0] sm:$0xff]
    %v200 = vld [vmem:[#allocation2 + $0x4f8] sm:$0xff]
    %v201 = vld [vmem:[#allocation2 + $0x500] sm:$0xff]
    %v202 = vld [vmem:[#allocation2 + $0x508] sm:$0xff]
    %v203 = vld [vmem:[#allocation2 + $0x510] sm:$0xff]
    %v204 = vld [vmem:[#allocation2 + $0x518] sm:$0xff]
    %v205 = vld [vmem:[#allocation2 + $0x520] sm:$0xff]
    %v206 = vld [vmem:[#allocation2 + $0x528] sm:$0xff]
    %v207 = vld [vmem:[#allocation2 + $0x530] sm:$0xff]
    %v208 = vld [vmem:[#allocation2 + $0x538] sm:$0xff]
    %v209 = vld [vmem:[#allocation2 + $0x540] sm:$0xff]
    %v210 = vld [vmem:[#allocation2 + $0x548] sm:$0xff]
    %v211 = vld [vmem:[#allocation2 + $0x550] sm:$0xff]
    %v212 = vld [vmem:[#allocation2 + $0x558] sm:$0xff]
    %v213 = vld [vmem:[#allocation2 + $0x560] sm:$0xff]
    %v214 = vld [vmem:[#allocation2 + $0x568] sm:$0xff]
    %v215 = vld [vmem:[#allocation2 + $0x570] sm:$0xff]
    %v216 = vld [vmem:[#allocation2 + $0x578] sm:$0xff]
    %v217 = vld [vmem:[#allocation2 + $0x580] sm:$0xff]
    %v218 = vld [vmem:[#allocation2 + $0x588] sm:$0xff]
    %v219 = vld [vmem:[#allocation2 + $0x590] sm:$0xff]
    %v220 = vld [vmem:[#allocation2 + $0x598] sm:$0xff]
    %v221 = vld [vmem:[#allocation2 + $0x5a0] sm:$0xff]
    %v222 = vld [vmem:[#allocation2 + $0x5a8] sm:$0xff]
    %v223 = vld [vmem:[#allocation2 + $0x5b0] sm:$0xff]
    %v224 = vld [vmem:[#allocation2 + $0x5b8] sm:$0xff]
    %v225 = vld [vmem:[#allocation2 + $0x5c0] sm:$0xff]
    %v226 = vld [vmem:[#allocation2 + $0x5c8] sm:$0xff]
    %v227 = vld [vmem:[#allocation2 + $0x5d0] sm:$0xff]
    %v228 = vld [vmem:[#allocation2 + $0x5d8] sm:$0xff]
    %v229 = vld [vmem:[#allocation2 + $0x5e0] sm:$0xff]
    %v230 = vld [vmem:[#allocation2 + $0x5e8] sm:$0xff]
    %v231 = vld [vmem:[#allocation2 + $0x5f0] sm:$0xff]
    %v232 = vld [vmem:[#allocation2 + $0x5f8] sm:$0xff]
    %v233 = vld [vmem:[#allocation2 + $0x600] sm:$0xff]
    %v234 = vld [vmem:[#allocation2 + $0x608] sm:$0xff]
    %v235 = vld [vmem:[#allocation2 + $0x610] sm:$0xff]
    %v236 = vld [vmem:[#allocation2 + $0x618] sm:$0xff]
    %v237 = vld [vmem:[#allocation2 + $0x620] sm:$0xff]
    %v238 = vld [vmem:[#allocation2 + $0x628] sm:$0xff]
    %v239 = vld [vmem:[#allocation2 + $0x630] sm:$0xff]
    %v240 = vld [vmem:[#allocation2 + $0x638] sm:$0xff]
    %v241 = vld [vmem:[#allocation2 + $0x640] sm:$0xff]
    %v242 = vld [vmem:[#allocation2 + $0x648] sm:$0xff]
    %v243 = vld [vmem:[#allocation2 + $0x650] sm:$0xff]
    %v244 = vld [vmem:[#allocation2 + $0x658] sm:$0xff]
    %v245 = vld [vmem:[#allocation2 + $0x660] sm:$0xff]
    %v246 = vld [vmem:[#allocation2 + $0x668] sm:$0xff]
    %v247 = vld [vmem:[#allocation2 + $0x670] sm:$0xff]
    %v248 = vld [vmem:[#allocation2 + $0x678] sm:$0xff]
    %v249 = vld [vmem:[#allocation2 + $0x680] sm:$0xff]
    %v250 = vld [vmem:[#allocation2 + $0x688] sm:$0xff]
    %v251 = vld [vmem:[#allocation2 + $0x690] sm:$0xff]
    %v252 = vld [vmem:[#allocation2 + $0x698] sm:$0xff]
    %v253 = vld [vmem:[#allocation2 + $0x6a0] sm:$0xff]
    %v254 = vld [vmem:[#allocation2 + $0x6a8] sm:$0xff]
    %v255 = vld [vmem:[#allocation2 + $0x6b0] sm:$0xff]
    %v256 = vld [vmem:[#allocation2 + $0x6b8] sm:$0xff]
    %v257 = vld [vmem:[#allocation2 + $0x6c0] sm:$0xff]
    %v258 = vld [vmem:[#allocation2 + $0x6c8] sm:$0xff]
    %v259 = vld [vmem:[#allocation2 + $0x6d0] sm:$0xff]
    %v260 = vld [vmem:[#allocation2 + $0x6d8] sm:$0xff]
    %v261 = vld [vmem:[#allocation2 + $0x6e0] sm:$0xff]
    %v262 = vld [vmem:[#allocation2 + $0x6e8] sm:$0xff]
    %v263 = vld [vmem:[#allocation2 + $0x6f0] sm:$0xff]
    %v264 = vld [vmem:[#allocation2 + $0x6f8] sm:$0xff]
    %v265 = vld [vmem:[#allocation2 + $0x700] sm:$0xff]
    %v266 = vld [vmem:[#allocation2 + $0x708] sm:$0xff]
    %v267 = vld [vmem:[#allocation2 + $0x710] sm:$0xff]
    %v268 = vld [vmem:[#allocation2 + $0x718] sm:$0xff]
    %v269 = vld [vmem:[#allocation2 + $0x720] sm:$0xff]
    %v270 = vld [vmem:[#allocation2 + $0x728] sm:$0xff]
    %v271 = vld [vmem:[#allocation2 + $0x730] sm:$0xff]
    %v272 = vld [vmem:[#allocation2 + $0x738] sm:$0xff]
    %v273 = vld [vmem:[#allocation2 + $0x740] sm:$0xff]
    %v274 = vld [vmem:[#allocation2 + $0x748] sm:$0xff]
    %v275 = vld [vmem:[#allocation2 + $0x750] sm:$0xff]
    %v276 = vld [vmem:[#allocation2 + $0x758] sm:$0xff]
    %v277 = vld [vmem:[#allocation2 + $0x760] sm:$0xff]
    %v278 = vld [vmem:[#allocation2 + $0x768] sm:$0xff]
    %v279 = vld [vmem:[#allocation2 + $0x770] sm:$0xff]
    %v280 = vld [vmem:[#allocation2 + $0x778] sm:$0xff]
    %v281 = vld [vmem:[#allocation2 + $0x780] sm:$0xff]
    %v282 = vld [vmem:[#allocation2 + $0x788] sm:$0xff]
    %v283 = vld [vmem:[#allocation2 + $0x790] sm:$0xff]
    %v284 = vld [vmem:[#allocation2 + $0x798] sm:$0xff]
    %v285 = vld [vmem:[#allocation2 + $0x7a0] sm:$0xff]
    %v286 = vld [vmem:[#allocation2 + $0x7a8] sm:$0xff]
    %v287 = vld [vmem:[#allocation2 + $0x7b0] sm:$0xff]
    %v288 = vld [vmem:[#allocation2 + $0x7b8] sm:$0xff]
    %v289 = vld [vmem:[#allocation2 + $0x7c0] sm:$0xff]
    %v290 = vld [vmem:[#allocation2 + $0x7c8] sm:$0xff]
    %v291 = vld [vmem:[#allocation2 + $0x7d0] sm:$0xff]
    %v292 = vld [vmem:[#allocation2 + $0x7d8] sm:$0xff]
    %v293 = vld [vmem:[#allocation2 + $0x7e0] sm:$0xff]
    %v294 = vld [vmem:[#allocation2 + $0x7e8] sm:$0xff]
    %v295 = vld [vmem:[#allocation2 + $0x7f0] sm:$0xff]
    %v296 = vld [vmem:[#allocation2 + $0x7f8] sm:$0xff]
    %v297 = vld [vmem:[%s2] sm:$0x3]
    %v299 = vperm.slane %v297, 0
    %v300 = vperm.slane %v297, 1
    %v311 = vunpack.c.l.b16 %v33
    %v312 = vunpack.c.h.b16 %v33
    %v313 = vunpack.c.l.b16 %v34
    %v314 = vunpack.c.h.b16 %v34
    %v315 = vunpack.c.l.b16 %v35
    %v316 = vunpack.c.h.b16 %v35
    %v317 = vunpack.c.l.b16 %v36
    %v318 = vunpack.c.h.b16 %v36
    %v319 = vunpack.c.l.b16 %v37
    %v320 = vunpack.c.h.b16 %v37
    %v321 = vunpack.c.l.b16 %v38
    %v322 = vunpack.c.h.b16 %v38
    %v323 = vunpack.c.l.b16 %v39
    %v324 = vunpack.c.h.b16 %v39
    %v325 = vunpack.c.l.b16 %v40
    %v326 = vunpack.c.h.b16 %v40
    %v327 = vpack.c.b16 %v311, %v311
    %v328 = vpack.c.b16 %v312, %v312
    %v329 = vpack.c.b16 %v313, %v313
    %v330 = vpack.c.b16 %v314, %v314
    %v331 = vpack.c.b16 %v315, %v315
    %v332 = vpack.c.b16 %v316, %v316
    %v333 = vpack.c.b16 %v317, %v317
    %v334 = vpack.c.b16 %v318, %v318
    %v335 = vpack.c.b16 %v319, %v319
    %v336 = vpack.c.b16 %v320, %v320
    %v337 = vpack.c.b16 %v321, %v321
    %v338 = vpack.c.b16 %v322, %v322
    %v339 = vpack.c.b16 %v323, %v323
    %v340 = vpack.c.b16 %v324, %v324
    %v341 = vpack.c.b16 %v325, %v325
    %v342 = vpack.c.b16 %v326, %v326
    %v615 = vunpack.c.l.b16 %v41
    %v616 = vunpack.c.h.b16 %v41
    %v617 = vunpack.c.l.b16 %v42
    %v618 = vunpack.c.h.b16 %v42
    %v619 = vunpack.c.l.b16 %v43
    %v620 = vunpack.c.h.b16 %v43
    %v621 = vunpack.c.l.b16 %v44
    %v622 = vunpack.c.h.b16 %v44
    %v623 = vunpack.c.l.b16 %v45
    %v624 = vunpack.c.h.b16 %v45
    %v625 = vunpack.c.l.b16 %v46
    %v626 = vunpack.c.h.b16 %v46
    %v627 = vunpack.c.l.b16 %v47
    %v628 = vunpack.c.h.b16 %v47
    %v629 = vunpack.c.l.b16 %v48
    %v630 = vunpack.c.h.b16 %v48
    %v631 = vunpack.c.l.b16 %v49
    %v632 = vunpack.c.h.b16 %v49
    %v633 = vunpack.c.l.b16 %v50
    %v634 = vunpack.c.h.b16 %v50
    %v635 = vunpack.c.l.b16 %v51
    %v636 = vunpack.c.h.b16 %v51
    %v637 = vunpack.c.l.b16 %v52
    %v638 = vunpack.c.h.b16 %v52
    %v639 = vunpack.c.l.b16 %v53
    %v640 = vunpack.c.h.b16 %v53
    %v641 = vunpack.c.l.b16 %v54
    %v642 = vunpack.c.h.b16 %v54
    %v643 = vunpack.c.l.b16 %v55
    %v644 = vunpack.c.h.b16 %v55
    %v645 = vunpack.c.l.b16 %v56
    %v646 = vunpack.c.h.b16 %v56
    %v647 = vunpack.c.l.b16 %v57
    %v648 = vunpack.c.h.b16 %v57
    %v649 = vunpack.c.l.b16 %v58
    %v650 = vunpack.c.h.b16 %v58
    %v651 = vunpack.c.l.b16 %v59
    %v652 = vunpack.c.h.b16 %v59
    %v653 = vunpack.c.l.b16 %v60
    %v654 = vunpack.c.h.b16 %v60
    %v655 = vunpack.c.l.b16 %v61
    %v656 = vunpack.c.h.b16 %v61
    %v657 = vunpack.c.l.b16 %v62
    %v658 = vunpack.c.h.b16 %v62
    %v659 = vunpack.c.l.b16 %v63
    %v660 = vunpack.c.h.b16 %v63
    %v661 = vunpack.c.l.b16 %v64
    %v662 = vunpack.c.h.b16 %v64
    %v663 = vunpack.c.l.b16 %v65
    %v664 = vunpack.c.h.b16 %v65
    %v665 = vunpack.c.l.b16 %v66
    %v666 = vunpack.c.h.b16 %v66
    %v667 = vunpack.c.l.b16 %v67
    %v668 = vunpack.c.h.b16 %v67
    %v669 = vunpack.c.l.b16 %v68
    %v670 = vunpack.c.h.b16 %v68
    %v671 = vunpack.c.l.b16 %v69
    %v672 = vunpack.c.h.b16 %v69
    %v673 = vunpack.c.l.b16 %v70
    %v674 = vunpack.c.h.b16 %v70
    %v675 = vunpack.c.l.b16 %v71
    %v676 = vunpack.c.h.b16 %v71
    %v677 = vunpack.c.l.b16 %v72
    %v678 = vunpack.c.h.b16 %v72
    %v679 = vunpack.c.l.b16 %v73
    %v680 = vunpack.c.h.b16 %v73
    %v681 = vunpack.c.l.b16 %v74
    %v682 = vunpack.c.h.b16 %v74
    %v683 = vunpack.c.l.b16 %v75
    %v684 = vunpack.c.h.b16 %v75
    %v685 = vunpack.c.l.b16 %v76
    %v686 = vunpack.c.h.b16 %v76
    %v687 = vunpack.c.l.b16 %v77
    %v688 = vunpack.c.h.b16 %v77
    %v689 = vunpack.c.l.b16 %v78
    %v690 = vunpack.c.h.b16 %v78
    %v691 = vunpack.c.l.b16 %v79
    %v692 = vunpack.c.h.b16 %v79
    %v693 = vunpack.c.l.b16 %v80
    %v694 = vunpack.c.h.b16 %v80
    %v695 = vunpack.c.l.b16 %v81
    %v696 = vunpack.c.h.b16 %v81
    %v697 = vunpack.c.l.b16 %v82
    %v698 = vunpack.c.h.b16 %v82
    %v699 = vunpack.c.l.b16 %v83
    %v700 = vunpack.c.h.b16 %v83
    %v701 = vunpack.c.l.b16 %v84
    %v702 = vunpack.c.h.b16 %v84
    %v703 = vunpack.c.l.b16 %v85
    %v704 = vunpack.c.h.b16 %v85
    %v705 = vunpack.c.l.b16 %v86
    %v706 = vunpack.c.h.b16 %v86
    %v707 = vunpack.c.l.b16 %v87
    %v708 = vunpack.c.h.b16 %v87
    %v709 = vunpack.c.l.b16 %v88
    %v710 = vunpack.c.h.b16 %v88
    %v711 = vunpack.c.l.b16 %v89
    %v712 = vunpack.c.h.b16 %v89
    %v713 = vunpack.c.l.b16 %v90
    %v714 = vunpack.c.h.b16 %v90
    %v715 = vunpack.c.l.b16 %v91
    %v716 = vunpack.c.h.b16 %v91
    %v717 = vunpack.c.l.b16 %v92
    %v718 = vunpack.c.h.b16 %v92
    %v719 = vunpack.c.l.b16 %v93
    %v720 = vunpack.c.h.b16 %v93
    %v721 = vunpack.c.l.b16 %v94
    %v722 = vunpack.c.h.b16 %v94
    %v723 = vunpack.c.l.b16 %v95
    %v724 = vunpack.c.h.b16 %v95
    %v725 = vunpack.c.l.b16 %v96
    %v726 = vunpack.c.h.b16 %v96
    %v727 = vunpack.c.l.b16 %v97
    %v728 = vunpack.c.h.b16 %v97
    %v729 = vunpack.c.l.b16 %v98
    %v730 = vunpack.c.h.b16 %v98
    %v731 = vunpack.c.l.b16 %v99
    %v732 = vunpack.c.h.b16 %v99
    %v733 = vunpack.c.l.b16 %v100
    %v734 = vunpack.c.h.b16 %v100
    %v735 = vunpack.c.l.b16 %v101
    %v736 = vunpack.c.h.b16 %v101
    %v737 = vunpack.c.l.b16 %v102
    %v738 = vunpack.c.h.b16 %v102
    %v739 = vunpack.c.l.b16 %v103
    %v740 = vunpack.c.h.b16 %v103
    %v741 = vunpack.c.l.b16 %v104
    %v742 = vunpack.c.h.b16 %v104
    %v743 = vunpack.c.l.b16 %v105
    %v744 = vunpack.c.h.b16 %v105
    %v745 = vunpack.c.l.b16 %v106
    %v746 = vunpack.c.h.b16 %v106
    %v747 = vunpack.c.l.b16 %v107
    %v748 = vunpack.c.h.b16 %v107
    %v749 = vunpack.c.l.b16 %v108
    %v750 = vunpack.c.h.b16 %v108
    %v751 = vunpack.c.l.b16 %v109
    %v752 = vunpack.c.h.b16 %v109
    %v753 = vunpack.c.l.b16 %v110
    %v754 = vunpack.c.h.b16 %v110
    %v755 = vunpack.c.l.b16 %v111
    %v756 = vunpack.c.h.b16 %v111
    %v757 = vunpack.c.l.b16 %v112
    %v758 = vunpack.c.h.b16 %v112
    %v759 = vunpack.c.l.b16 %v113
    %v760 = vunpack.c.h.b16 %v113
    %v761 = vunpack.c.l.b16 %v114
    %v762 = vunpack.c.h.b16 %v114
    %v763 = vunpack.c.l.b16 %v115
    %v764 = vunpack.c.h.b16 %v115
    %v765 = vunpack.c.l.b16 %v116
    %v766 = vunpack.c.h.b16 %v116
    %v767 = vunpack.c.l.b16 %v117
    %v768 = vunpack.c.h.b16 %v117
    %v769 = vunpack.c.l.b16 %v118
    %v770 = vunpack.c.h.b16 %v118
    %v771 = vunpack.c.l.b16 %v119
    %v772 = vunpack.c.h.b16 %v119
    %v773 = vunpack.c.l.b16 %v120
    %v774 = vunpack.c.h.b16 %v120
    %v775 = vunpack.c.l.b16 %v121
    %v776 = vunpack.c.h.b16 %v121
    %v777 = vunpack.c.l.b16 %v122
    %v778 = vunpack.c.h.b16 %v122
    %v779 = vunpack.c.l.b16 %v123
    %v780 = vunpack.c.h.b16 %v123
    %v781 = vunpack.c.l.b16 %v124
    %v782 = vunpack.c.h.b16 %v124
    %v783 = vunpack.c.l.b16 %v125
    %v784 = vunpack.c.h.b16 %v125
    %v785 = vunpack.c.l.b16 %v126
    %v786 = vunpack.c.h.b16 %v126
    %v787 = vunpack.c.l.b16 %v127
    %v788 = vunpack.c.h.b16 %v127
    %v789 = vunpack.c.l.b16 %v128
    %v790 = vunpack.c.h.b16 %v128
    %v791 = vunpack.c.l.b16 %v129
    %v792 = vunpack.c.h.b16 %v129
    %v793 = vunpack.c.l.b16 %v130
    %v794 = vunpack.c.h.b16 %v130
    %v795 = vunpack.c.l.b16 %v131
    %v796 = vunpack.c.h.b16 %v131
    %v797 = vunpack.c.l.b16 %v132
    %v798 = vunpack.c.h.b16 %v132
    %v799 = vunpack.c.l.b16 %v133
    %v800 = vunpack.c.h.b16 %v133
    %v801 = vunpack.c.l.b16 %v134
    %v802 = vunpack.c.h.b16 %v134
    %v803 = vunpack.c.l.b16 %v135
    %v804 = vunpack.c.h.b16 %v135
    %v805 = vunpack.c.l.b16 %v136
    %v806 = vunpack.c.h.b16 %v136
    %v807 = vunpack.c.l.b16 %v137
    %v808 = vunpack.c.h.b16 %v137
    %v809 = vunpack.c.l.b16 %v138
    %v810 = vunpack.c.h.b16 %v138
    %v811 = vunpack.c.l.b16 %v139
    %v812 = vunpack.c.h.b16 %v139
    %v813 = vunpack.c.l.b16 %v140
    %v814 = vunpack.c.h.b16 %v140
    %v815 = vunpack.c.l.b16 %v141
    %v816 = vunpack.c.h.b16 %v141
    %v817 = vunpack.c.l.b16 %v142
    %v818 = vunpack.c.h.b16 %v142
    %v819 = vunpack.c.l.b16 %v143
    %v820 = vunpack.c.h.b16 %v143
    %v821 = vunpack.c.l.b16 %v144
    %v822 = vunpack.c.h.b16 %v144
    %v823 = vunpack.c.l.b16 %v145
    %v824 = vunpack.c.h.b16 %v145
    %v825 = vunpack.c.l.b16 %v146
    %v826 = vunpack.c.h.b16 %v146
    %v827 = vunpack.c.l.b16 %v147
    %v828 = vunpack.c.h.b16 %v147
    %v829 = vunpack.c.l.b16 %v148
    %v830 = vunpack.c.h.b16 %v148
    %v831 = vunpack.c.l.b16 %v149
    %v832 = vunpack.c.h.b16 %v149
    %v833 = vunpack.c.l.b16 %v150
    %v834 = vunpack.c.h.b16 %v150
    %v835 = vunpack.c.l.b16 %v151
    %v836 = vunpack.c.h.b16 %v151
    %v837 = vunpack.c.l.b16 %v152
    %v838 = vunpack.c.h.b16 %v152
    %v839 = vunpack.c.l.b16 %v153
    %v840 = vunpack.c.h.b16 %v153
    %v841 = vunpack.c.l.b16 %v154
    %v842 = vunpack.c.h.b16 %v154
    %v843 = vunpack.c.l.b16 %v155
    %v844 = vunpack.c.h.b16 %v155
    %v845 = vunpack.c.l.b16 %v156
    %v846 = vunpack.c.h.b16 %v156
    %v847 = vunpack.c.l.b16 %v157
    %v848 = vunpack.c.h.b16 %v157
    %v849 = vunpack.c.l.b16 %v158
    %v850 = vunpack.c.h.b16 %v158
    %v851 = vunpack.c.l.b16 %v159
    %v852 = vunpack.c.h.b16 %v159
    %v853 = vunpack.c.l.b16 %v160
    %v854 = vunpack.c.h.b16 %v160
    %v855 = vunpack.c.l.b16 %v161
    %v856 = vunpack.c.h.b16 %v161
    %v857 = vunpack.c.l.b16 %v162
    %v858 = vunpack.c.h.b16 %v162
    %v859 = vunpack.c.l.b16 %v163
    %v860 = vunpack.c.h.b16 %v163
    %v861 = vunpack.c.l.b16 %v164
    %v862 = vunpack.c.h.b16 %v164
    %v863 = vunpack.c.l.b16 %v165
    %v864 = vunpack.c.h.b16 %v165
    %v865 = vunpack.c.l.b16 %v166
    %v866 = vunpack.c.h.b16 %v166
    %v867 = vunpack.c.l.b16 %v167
    %v868 = vunpack.c.h.b16 %v167
    %v869 = vunpack.c.l.b16 %v168
    %v870 = vunpack.c.h.b16 %v168
    %v871 = vunpack.c.l.b16 %v169
    %v872 = vunpack.c.h.b16 %v169
    %v873 = vunpack.c.l.b16 %v170
    %v874 = vunpack.c.h.b16 %v170
    %v875 = vunpack.c.l.b16 %v171
    %v876 = vunpack.c.h.b16 %v171
    %v877 = vunpack.c.l.b16 %v172
    %v878 = vunpack.c.h.b16 %v172
    %v879 = vunpack.c.l.b16 %v173
    %v880 = vunpack.c.h.b16 %v173
    %v881 = vunpack.c.l.b16 %v174
    %v882 = vunpack.c.h.b16 %v174
    %v883 = vunpack.c.l.b16 %v175
    %v884 = vunpack.c.h.b16 %v175
    %v885 = vunpack.c.l.b16 %v176
    %v886 = vunpack.c.h.b16 %v176
    %v887 = vunpack.c.l.b16 %v177
    %v888 = vunpack.c.h.b16 %v177
    %v889 = vunpack.c.l.b16 %v178
    %v890 = vunpack.c.h.b16 %v178
    %v891 = vunpack.c.l.b16 %v179
    %v892 = vunpack.c.h.b16 %v179
    %v893 = vunpack.c.l.b16 %v180
    %v894 = vunpack.c.h.b16 %v180
    %v895 = vunpack.c.l.b16 %v181
    %v896 = vunpack.c.h.b16 %v181
    %v897 = vunpack.c.l.b16 %v182
    %v898 = vunpack.c.h.b16 %v182
    %v899 = vunpack.c.l.b16 %v183
    %v900 = vunpack.c.h.b16 %v183
    %v901 = vunpack.c.l.b16 %v184
    %v902 = vunpack.c.h.b16 %v184
    %v903 = vunpack.c.l.b16 %v185
    %v904 = vunpack.c.h.b16 %v185
    %v905 = vunpack.c.l.b16 %v186
    %v906 = vunpack.c.h.b16 %v186
    %v907 = vunpack.c.l.b16 %v187
    %v908 = vunpack.c.h.b16 %v187
    %v909 = vunpack.c.l.b16 %v188
    %v910 = vunpack.c.h.b16 %v188
    %v911 = vunpack.c.l.b16 %v189
    %v912 = vunpack.c.h.b16 %v189
    %v913 = vunpack.c.l.b16 %v190
    %v914 = vunpack.c.h.b16 %v190
    %v915 = vunpack.c.l.b16 %v191
    %v916 = vunpack.c.h.b16 %v191
    %v917 = vunpack.c.l.b16 %v192
    %v918 = vunpack.c.h.b16 %v192
    %v919 = vunpack.c.l.b16 %v193
    %v920 = vunpack.c.h.b16 %v193
    %v921 = vunpack.c.l.b16 %v194
    %v922 = vunpack.c.h.b16 %v194
    %v923 = vunpack.c.l.b16 %v195
    %v924 = vunpack.c.h.b16 %v195
    %v925 = vunpack.c.l.b16 %v196
    %v926 = vunpack.c.h.b16 %v196
    %v927 = vunpack.c.l.b16 %v197
    %v928 = vunpack.c.h.b16 %v197
    %v929 = vunpack.c.l.b16 %v198
    %v930 = vunpack.c.h.b16 %v198
    %v931 = vunpack.c.l.b16 %v199
    %v932 = vunpack.c.h.b16 %v199
    %v933 = vunpack.c.l.b16 %v200
    %v934 = vunpack.c.h.b16 %v200
    %v935 = vunpack.c.l.b16 %v201
    %v936 = vunpack.c.h.b16 %v201
    %v937 = vunpack.c.l.b16 %v202
    %v938 = vunpack.c.h.b16 %v202
    %v939 = vunpack.c.l.b16 %v203
    %v940 = vunpack.c.h.b16 %v203
    %v941 = vunpack.c.l.b16 %v204
    %v942 = vunpack.c.h.b16 %v204
    %v943 = vunpack.c.l.b16 %v205
    %v944 = vunpack.c.h.b16 %v205
    %v945 = vunpack.c.l.b16 %v206
    %v946 = vunpack.c.h.b16 %v206
    %v947 = vunpack.c.l.b16 %v207
    %v948 = vunpack.c.h.b16 %v207
    %v949 = vunpack.c.l.b16 %v208
    %v950 = vunpack.c.h.b16 %v208
    %v951 = vunpack.c.l.b16 %v209
    %v952 = vunpack.c.h.b16 %v209
    %v953 = vunpack.c.l.b16 %v210
    %v954 = vunpack.c.h.b16 %v210
    %v955 = vunpack.c.l.b16 %v211
    %v956 = vunpack.c.h.b16 %v211
    %v957 = vunpack.c.l.b16 %v212
    %v958 = vunpack.c.h.b16 %v212
    %v959 = vunpack.c.l.b16 %v213
    %v960 = vunpack.c.h.b16 %v213
    %v961 = vunpack.c.l.b16 %v214
    %v962 = vunpack.c.h.b16 %v214
    %v963 = vunpack.c.l.b16 %v215
    %v964 = vunpack.c.h.b16 %v215
    %v965 = vunpack.c.l.b16 %v216
    %v966 = vunpack.c.h.b16 %v216
    %v967 = vunpack.c.l.b16 %v217
    %v968 = vunpack.c.h.b16 %v217
    %v969 = vunpack.c.l.b16 %v218
    %v970 = vunpack.c.h.b16 %v218
    %v971 = vunpack.c.l.b16 %v219
    %v972 = vunpack.c.h.b16 %v219
    %v973 = vunpack.c.l.b16 %v220
    %v974 = vunpack.c.h.b16 %v220
    %v975 = vunpack.c.l.b16 %v221
    %v976 = vunpack.c.h.b16 %v221
    %v977 = vunpack.c.l.b16 %v222
    %v978 = vunpack.c.h.b16 %v222
    %v979 = vunpack.c.l.b16 %v223
    %v980 = vunpack.c.h.b16 %v223
    %v981 = vunpack.c.l.b16 %v224
    %v982 = vunpack.c.h.b16 %v224
    %v983 = vunpack.c.l.b16 %v225
    %v984 = vunpack.c.h.b16 %v225
    %v985 = vunpack.c.l.b16 %v226
    %v986 = vunpack.c.h.b16 %v226
    %v987 = vunpack.c.l.b16 %v227
    %v988 = vunpack.c.h.b16 %v227
    %v989 = vunpack.c.l.b16 %v228
    %v990 = vunpack.c.h.b16 %v228
    %v991 = vunpack.c.l.b16 %v229
    %v992 = vunpack.c.h.b16 %v229
    %v993 = vunpack.c.l.b16 %v230
    %v994 = vunpack.c.h.b16 %v230
    %v995 = vunpack.c.l.b16 %v231
    %v996 = vunpack.c.h.b16 %v231
    %v997 = vunpack.c.l.b16 %v232
    %v998 = vunpack.c.h.b16 %v232
    %v999 = vunpack.c.l.b16 %v233
    %v1000 = vunpack.c.h.b16 %v233
    %v1001 = vunpack.c.l.b16 %v234
    %v1002 = vunpack.c.h.b16 %v234
    %v1003 = vunpack.c.l.b16 %v235
    %v1004 = vunpack.c.h.b16 %v235
    %v1005 = vunpack.c.l.b16 %v236
    %v1006 = vunpack.c.h.b16 %v236
    %v1007 = vunpack.c.l.b16 %v237
    %v1008 = vunpack.c.h.b16 %v237
    %v1009 = vunpack.c.l.b16 %v238
    %v1010 = vunpack.c.h.b16 %v238
    %v1011 = vunpack.c.l.b16 %v239
    %v1012 = vunpack.c.h.b16 %v239
    %v1013 = vunpack.c.l.b16 %v240
    %v1014 = vunpack.c.h.b16 %v240
    %v1015 = vunpack.c.l.b16 %v241
    %v1016 = vunpack.c.h.b16 %v241
    %v1017 = vunpack.c.l.b16 %v242
    %v1018 = vunpack.c.h.b16 %v242
    %v1019 = vunpack.c.l.b16 %v243
    %v1020 = vunpack.c.h.b16 %v243
    %v1021 = vunpack.c.l.b16 %v244
    %v1022 = vunpack.c.h.b16 %v244
    %v1023 = vunpack.c.l.b16 %v245
    %v1024 = vunpack.c.h.b16 %v245
    %v1025 = vunpack.c.l.b16 %v246
    %v1026 = vunpack.c.h.b16 %v246
    %v1027 = vunpack.c.l.b16 %v247
    %v1028 = vunpack.c.h.b16 %v247
    %v1029 = vunpack.c.l.b16 %v248
    %v1030 = vunpack.c.h.b16 %v248
    %v1031 = vunpack.c.l.b16 %v249
    %v1032 = vunpack.c.h.b16 %v249
    %v1033 = vunpack.c.l.b16 %v250
    %v1034 = vunpack.c.h.b16 %v250
    %v1035 = vunpack.c.l.b16 %v251
    %v1036 = vunpack.c.h.b16 %v251
    %v1037 = vunpack.c.l.b16 %v252
    %v1038 = vunpack.c.h.b16 %v252
    %v1039 = vunpack.c.l.b16 %v253
    %v1040 = vunpack.c.h.b16 %v253
    %v1041 = vunpack.c.l.b16 %v254
    %v1042 = vunpack.c.h.b16 %v254
    %v1043 = vunpack.c.l.b16 %v255
    %v1044 = vunpack.c.h.b16 %v255
    %v1045 = vunpack.c.l.b16 %v256
    %v1046 = vunpack.c.h.b16 %v256
    %v1047 = vunpack.c.l.b16 %v257
    %v1048 = vunpack.c.h.b16 %v257
    %v1049 = vunpack.c.l.b16 %v258
    %v1050 = vunpack.c.h.b16 %v258
    %v1051 = vunpack.c.l.b16 %v259
    %v1052 = vunpack.c.h.b16 %v259
    %v1053 = vunpack.c.l.b16 %v260
    %v1054 = vunpack.c.h.b16 %v260
    %v1055 = vunpack.c.l.b16 %v261
    %v1056 = vunpack.c.h.b16 %v261
    %v1057 = vunpack.c.l.b16 %v262
    %v1058 = vunpack.c.h.b16 %v262
    %v1059 = vunpack.c.l.b16 %v263
    %v1060 = vunpack.c.h.b16 %v263
    %v1061 = vunpack.c.l.b16 %v264
    %v1062 = vunpack.c.h.b16 %v264
    %v1063 = vunpack.c.l.b16 %v265
    %v1064 = vunpack.c.h.b16 %v265
    %v1065 = vunpack.c.l.b16 %v266
    %v1066 = vunpack.c.h.b16 %v266
    %v1067 = vunpack.c.l.b16 %v267
    %v1068 = vunpack.c.h.b16 %v267
    %v1069 = vunpack.c.l.b16 %v268
    %v1070 = vunpack.c.h.b16 %v268
    %v1071 = vunpack.c.l.b16 %v269
    %v1072 = vunpack.c.h.b16 %v269
    %v1073 = vunpack.c.l.b16 %v270
    %v1074 = vunpack.c.h.b16 %v270
    %v1075 = vunpack.c.l.b16 %v271
    %v1076 = vunpack.c.h.b16 %v271
    %v1077 = vunpack.c.l.b16 %v272
    %v1078 = vunpack.c.h.b16 %v272
    %v1079 = vunpack.c.l.b16 %v273
    %v1080 = vunpack.c.h.b16 %v273
    %v1081 = vunpack.c.l.b16 %v274
    %v1082 = vunpack.c.h.b16 %v274
    %v1083 = vunpack.c.l.b16 %v275
    %v1084 = vunpack.c.h.b16 %v275
    %v1085 = vunpack.c.l.b16 %v276
    %v1086 = vunpack.c.h.b16 %v276
    %v1087 = vunpack.c.l.b16 %v277
    %v1088 = vunpack.c.h.b16 %v277
    %v1089 = vunpack.c.l.b16 %v278
    %v1090 = vunpack.c.h.b16 %v278
    %v1091 = vunpack.c.l.b16 %v279
    %v1092 = vunpack.c.h.b16 %v279
    %v1093 = vunpack.c.l.b16 %v280
    %v1094 = vunpack.c.h.b16 %v280
    %v1095 = vunpack.c.l.b16 %v281
    %v1096 = vunpack.c.h.b16 %v281
    %v1097 = vunpack.c.l.b16 %v282
    %v1098 = vunpack.c.h.b16 %v282
    %v1099 = vunpack.c.l.b16 %v283
    %v1100 = vunpack.c.h.b16 %v283
    %v1101 = vunpack.c.l.b16 %v284
    %v1102 = vunpack.c.h.b16 %v284
    %v1103 = vunpack.c.l.b16 %v285
    %v1104 = vunpack.c.h.b16 %v285
    %v1105 = vunpack.c.l.b16 %v286
    %v1106 = vunpack.c.h.b16 %v286
    %v1107 = vunpack.c.l.b16 %v287
    %v1108 = vunpack.c.h.b16 %v287
    %v1109 = vunpack.c.l.b16 %v288
    %v1110 = vunpack.c.h.b16 %v288
    %v1111 = vunpack.c.l.b16 %v289
    %v1112 = vunpack.c.h.b16 %v289
    %v1113 = vunpack.c.l.b16 %v290
    %v1114 = vunpack.c.h.b16 %v290
    %v1115 = vunpack.c.l.b16 %v291
    %v1116 = vunpack.c.h.b16 %v291
    %v1117 = vunpack.c.l.b16 %v292
    %v1118 = vunpack.c.h.b16 %v292
    %v1119 = vunpack.c.l.b16 %v293
    %v1120 = vunpack.c.h.b16 %v293
    %v1121 = vunpack.c.l.b16 %v294
    %v1122 = vunpack.c.h.b16 %v294
    %v1123 = vunpack.c.l.b16 %v295
    %v1124 = vunpack.c.h.b16 %v295
    %v1125 = vunpack.c.l.b16 %v296
    %v1126 = vunpack.c.h.b16 %v296
    %v1127 = vpack.c.b16 %v617, %v615
    %v1128 = vpack.c.b16 %v618, %v616
    %v1129 = vpack.c.b16 %v621, %v619
    %v1130 = vpack.c.b16 %v622, %v620
    %v1131 = vpack.c.b16 %v625, %v623
    %v1132 = vpack.c.b16 %v626, %v624
    %v1133 = vpack.c.b16 %v629, %v627
    %v1134 = vpack.c.b16 %v630, %v628
    %v1135 = vpack.c.b16 %v633, %v631
    %v1136 = vpack.c.b16 %v634, %v632
    %v1137 = vpack.c.b16 %v637, %v635
    %v1138 = vpack.c.b16 %v638, %v636
    %v1139 = vpack.c.b16 %v641, %v639
    %v1140 = vpack.c.b16 %v642, %v640
    %v1141 = vpack.c.b16 %v645, %v643
    %v1142 = vpack.c.b16 %v646, %v644
    %v1143 = vpack.c.b16 %v649, %v647
    %v1144 = vpack.c.b16 %v650, %v648
    %v1145 = vpack.c.b16 %v653, %v651
    %v1146 = vpack.c.b16 %v654, %v652
    %v1147 = vpack.c.b16 %v657, %v655
    %v1148 = vpack.c.b16 %v658, %v656
    %v1149 = vpack.c.b16 %v661, %v659
    %v1150 = vpack.c.b16 %v662, %v660
    %v1151 = vpack.c.b16 %v665, %v663
    %v1152 = vpack.c.b16 %v666, %v664
    %v1153 = vpack.c.b16 %v669, %v667
    %v1154 = vpack.c.b16 %v670, %v668
    %v1155 = vpack.c.b16 %v673, %v671
    %v1156 = vpack.c.b16 %v674, %v672
    %v1157 = vpack.c.b16 %v677, %v675
    %v1158 = vpack.c.b16 %v678, %v676
    %v1159 = vpack.c.b16 %v681, %v679
    %v1160 = vpack.c.b16 %v682, %v680
    %v1161 = vpack.c.b16 %v685, %v683
    %v1162 = vpack.c.b16 %v686, %v684
    %v1163 = vpack.c.b16 %v689, %v687
    %v1164 = vpack.c.b16 %v690, %v688
    %v1165 = vpack.c.b16 %v693, %v691
    %v1166 = vpack.c.b16 %v694, %v692
    %v1167 = vpack.c.b16 %v697, %v695
    %v1168 = vpack.c.b16 %v698, %v696
    %v1169 = vpack.c.b16 %v701, %v699
    %v1170 = vpack.c.b16 %v702, %v700
    %v1171 = vpack.c.b16 %v705, %v703
    %v1172 = vpack.c.b16 %v706, %v704
    %v1173 = vpack.c.b16 %v709, %v707
    %v1174 = vpack.c.b16 %v710, %v708
    %v1175 = vpack.c.b16 %v713, %v711
    %v1176 = vpack.c.b16 %v714, %v712
    %v1177 = vpack.c.b16 %v717, %v715
    %v1178 = vpack.c.b16 %v718, %v716
    %v1179 = vpack.c.b16 %v721, %v719
    %v1180 = vpack.c.b16 %v722, %v720
    %v1181 = vpack.c.b16 %v725, %v723
    %v1182 = vpack.c.b16 %v726, %v724
    %v1183 = vpack.c.b16 %v729, %v727
    %v1184 = vpack.c.b16 %v730, %v728
    %v1185 = vpack.c.b16 %v733, %v731
    %v1186 = vpack.c.b16 %v734, %v732
    %v1187 = vpack.c.b16 %v737, %v735
    %v1188 = vpack.c.b16 %v738, %v736
    %v1189 = vpack.c.b16 %v741, %v739
    %v1190 = vpack.c.b16 %v742, %v740
    %v1191 = vpack.c.b16 %v745, %v743
    %v1192 = vpack.c.b16 %v746, %v744
    %v1193 = vpack.c.b16 %v749, %v747
    %v1194 = vpack.c.b16 %v750, %v748
    %v1195 = vpack.c.b16 %v753, %v751
    %v1196 = vpack.c.b16 %v754, %v752
    %v1197 = vpack.c.b16 %v757, %v755
    %v1198 = vpack.c.b16 %v758, %v756
    %v1199 = vpack.c.b16 %v761, %v759
    %v1200 = vpack.c.b16 %v762, %v760
    %v1201 = vpack.c.b16 %v765, %v763
    %v1202 = vpack.c.b16 %v766, %v764
    %v1203 = vpack.c.b16 %v769, %v767
    %v1204 = vpack.c.b16 %v770, %v768
    %v1205 = vpack.c.b16 %v773, %v771
    %v1206 = vpack.c.b16 %v774, %v772
    %v1207 = vpack.c.b16 %v777, %v775
    %v1208 = vpack.c.b16 %v778, %v776
    %v1209 = vpack.c.b16 %v781, %v779
    %v1210 = vpack.c.b16 %v782, %v780
    %v1211 = vpack.c.b16 %v785, %v783
    %v1212 = vpack.c.b16 %v786, %v784
    %v1213 = vpack.c.b16 %v789, %v787
    %v1214 = vpack.c.b16 %v790, %v788
    %v1215 = vpack.c.b16 %v793, %v791
    %v1216 = vpack.c.b16 %v794, %v792
    %v1217 = vpack.c.b16 %v797, %v795
    %v1218 = vpack.c.b16 %v798, %v796
    %v1219 = vpack.c.b16 %v801, %v799
    %v1220 = vpack.c.b16 %v802, %v800
    %v1221 = vpack.c.b16 %v805, %v803
    %v1222 = vpack.c.b16 %v806, %v804
    %v1223 = vpack.c.b16 %v809, %v807
    %v1224 = vpack.c.b16 %v810, %v808
    %v1225 = vpack.c.b16 %v813, %v811
    %v1226 = vpack.c.b16 %v814, %v812
    %v1227 = vpack.c.b16 %v817, %v815
    %v1228 = vpack.c.b16 %v818, %v816
    %v1229 = vpack.c.b16 %v821, %v819
    %v1230 = vpack.c.b16 %v822, %v820
    %v1231 = vpack.c.b16 %v825, %v823
    %v1232 = vpack.c.b16 %v826, %v824
    %v1233 = vpack.c.b16 %v829, %v827
    %v1234 = vpack.c.b16 %v830, %v828
    %v1235 = vpack.c.b16 %v833, %v831
    %v1236 = vpack.c.b16 %v834, %v832
    %v1237 = vpack.c.b16 %v837, %v835
    %v1238 = vpack.c.b16 %v838, %v836
    %v1239 = vpack.c.b16 %v841, %v839
    %v1240 = vpack.c.b16 %v842, %v840
    %v1241 = vpack.c.b16 %v845, %v843
    %v1242 = vpack.c.b16 %v846, %v844
    %v1243 = vpack.c.b16 %v849, %v847
    %v1244 = vpack.c.b16 %v850, %v848
    %v1245 = vpack.c.b16 %v853, %v851
    %v1246 = vpack.c.b16 %v854, %v852
    %v1247 = vpack.c.b16 %v857, %v855
    %v1248 = vpack.c.b16 %v858, %v856
    %v1249 = vpack.c.b16 %v861, %v859
    %v1250 = vpack.c.b16 %v862, %v860
    %v1251 = vpack.c.b16 %v865, %v863
    %v1252 = vpack.c.b16 %v866, %v864
    %v1253 = vpack.c.b16 %v869, %v867
    %v1254 = vpack.c.b16 %v870, %v868
    %v1255 = vpack.c.b16 %v873, %v871
    %v1256 = vpack.c.b16 %v874, %v872
    %v1257 = vpack.c.b16 %v877, %v875
    %v1258 = vpack.c.b16 %v878, %v876
    %v1259 = vpack.c.b16 %v881, %v879
    %v1260 = vpack.c.b16 %v882, %v880
    %v1261 = vpack.c.b16 %v885, %v883
    %v1262 = vpack.c.b16 %v886, %v884
    %v1263 = vpack.c.b16 %v889, %v887
    %v1264 = vpack.c.b16 %v890, %v888
    %v1265 = vpack.c.b16 %v893, %v891
    %v1266 = vpack.c.b16 %v894, %v892
    %v1267 = vpack.c.b16 %v897, %v895
    %v1268 = vpack.c.b16 %v898, %v896
    %v1269 = vpack.c.b16 %v901, %v899
    %v1270 = vpack.c.b16 %v902, %v900
    %v1271 = vpack.c.b16 %v905, %v903
    %v1272 = vpack.c.b16 %v906, %v904
    %v1273 = vpack.c.b16 %v909, %v907
    %v1274 = vpack.c.b16 %v910, %v908
    %v1275 = vpack.c.b16 %v913, %v911
    %v1276 = vpack.c.b16 %v914, %v912
    %v1277 = vpack.c.b16 %v917, %v915
    %v1278 = vpack.c.b16 %v918, %v916
    %v1279 = vpack.c.b16 %v921, %v919
    %v1280 = vpack.c.b16 %v922, %v920
    %v1281 = vpack.c.b16 %v925, %v923
    %v1282 = vpack.c.b16 %v926, %v924
    %v1283 = vpack.c.b16 %v929, %v927
    %v1284 = vpack.c.b16 %v930, %v928
    %v1285 = vpack.c.b16 %v933, %v931
    %v1286 = vpack.c.b16 %v934, %v932
    %v1287 = vpack.c.b16 %v937, %v935
    %v1288 = vpack.c.b16 %v938, %v936
    %v1289 = vpack.c.b16 %v941, %v939
    %v1290 = vpack.c.b16 %v942, %v940
    %v1291 = vpack.c.b16 %v945, %v943
    %v1292 = vpack.c.b16 %v946, %v944
    %v1293 = vpack.c.b16 %v949, %v947
    %v1294 = vpack.c.b16 %v950, %v948
    %v1295 = vpack.c.b16 %v953, %v951
    %v1296 = vpack.c.b16 %v954, %v952
    %v1297 = vpack.c.b16 %v957, %v955
    %v1298 = vpack.c.b16 %v958, %v956
    %v1299 = vpack.c.b16 %v961, %v959
    %v1300 = vpack.c.b16 %v962, %v960
    %v1301 = vpack.c.b16 %v965, %v963
    %v1302 = vpack.c.b16 %v966, %v964
    %v1303 = vpack.c.b16 %v969, %v967
    %v1304 = vpack.c.b16 %v970, %v968
    %v1305 = vpack.c.b16 %v973, %v971
    %v1306 = vpack.c.b16 %v974, %v972
    %v1307 = vpack.c.b16 %v977, %v975
    %v1308 = vpack.c.b16 %v978, %v976
    %v1309 = vpack.c.b16 %v981, %v979
    %v1310 = vpack.c.b16 %v982, %v980
    %v1311 = vpack.c.b16 %v985, %v983
    %v1312 = vpack.c.b16 %v986, %v984
    %v1313 = vpack.c.b16 %v989, %v987
    %v1314 = vpack.c.b16 %v990, %v988
    %v1315 = vpack.c.b16 %v993, %v991
    %v1316 = vpack.c.b16 %v994, %v992
    %v1317 = vpack.c.b16 %v997, %v995
    %v1318 = vpack.c.b16 %v998, %v996
    %v1319 = vpack.c.b16 %v1001, %v999
    %v1320 = vpack.c.b16 %v1002, %v1000
    %v1321 = vpack.c.b16 %v1005, %v1003
    %v1322 = vpack.c.b16 %v1006, %v1004
    %v1323 = vpack.c.b16 %v1009, %v1007
    %v1324 = vpack.c.b16 %v1010, %v1008
    %v1325 = vpack.c.b16 %v1013, %v1011
    %v1326 = vpack.c.b16 %v1014, %v1012
    %v1327 = vpack.c.b16 %v1017, %v1015
    %v1328 = vpack.c.b16 %v1018, %v1016
    %v1329 = vpack.c.b16 %v1021, %v1019
    %v1330 = vpack.c.b16 %v1022, %v1020
    %v1331 = vpack.c.b16 %v1025, %v1023
    %v1332 = vpack.c.b16 %v1026, %v1024
    %v1333 = vpack.c.b16 %v1029, %v1027
    %v1334 = vpack.c.b16 %v1030, %v1028
    %v1335 = vpack.c.b16 %v1033, %v1031
    %v1336 = vpack.c.b16 %v1034, %v1032
    %v1337 = vpack.c.b16 %v1037, %v1035
    %v1338 = vpack.c.b16 %v1038, %v1036
    %v1339 = vpack.c.b16 %v1041, %v1039
    %v1340 = vpack.c.b16 %v1042, %v1040
    %v1341 = vpack.c.b16 %v1045, %v1043
    %v1342 = vpack.c.b16 %v1046, %v1044
    %v1343 = vpack.c.b16 %v1049, %v1047
    %v1344 = vpack.c.b16 %v1050, %v1048
    %v1345 = vpack.c.b16 %v1053, %v1051
    %v1346 = vpack.c.b16 %v1054, %v1052
    %v1347 = vpack.c.b16 %v1057, %v1055
    %v1348 = vpack.c.b16 %v1058, %v1056
    %v1349 = vpack.c.b16 %v1061, %v1059
    %v1350 = vpack.c.b16 %v1062, %v1060
    %v1351 = vpack.c.b16 %v1065, %v1063
    %v1352 = vpack.c.b16 %v1066, %v1064
    %v1353 = vpack.c.b16 %v1069, %v1067
    %v1354 = vpack.c.b16 %v1070, %v1068
    %v1355 = vpack.c.b16 %v1073, %v1071
    %v1356 = vpack.c.b16 %v1074, %v1072
    %v1357 = vpack.c.b16 %v1077, %v1075
    %v1358 = vpack.c.b16 %v1078, %v1076
    %v1359 = vpack.c.b16 %v1081, %v1079
    %v1360 = vpack.c.b16 %v1082, %v1080
    %v1361 = vpack.c.b16 %v1085, %v1083
    %v1362 = vpack.c.b16 %v1086, %v1084
    %v1363 = vpack.c.b16 %v1089, %v1087
    %v1364 = vpack.c.b16 %v1090, %v1088
    %v1365 = vpack.c.b16 %v1093, %v1091
    %v1366 = vpack.c.b16 %v1094, %v1092
    %v1367 = vpack.c.b16 %v1097, %v1095
    %v1368 = vpack.c.b16 %v1098, %v1096
    %v1369 = vpack.c.b16 %v1101, %v1099
    %v1370 = vpack.c.b16 %v1102, %v1100
    %v1371 = vpack.c.b16 %v1105, %v1103
    %v1372 = vpack.c.b16 %v1106, %v1104
    %v1373 = vpack.c.b16 %v1109, %v1107
    %v1374 = vpack.c.b16 %v1110, %v1108
    %v1375 = vpack.c.b16 %v1113, %v1111
    %v1376 = vpack.c.b16 %v1114, %v1112
    %v1377 = vpack.c.b16 %v1117, %v1115
    %v1378 = vpack.c.b16 %v1118, %v1116
    %v1379 = vpack.c.b16 %v1121, %v1119
    %v1380 = vpack.c.b16 %v1122, %v1120
    %v1381 = vpack.c.b16 %v1125, %v1123
    %v1382 = vpack.c.b16 %v1126, %v1124
    %1639 = vmatpush.bf16.msra.mxu0 %v1141
    %1640 = vmatpush.bf16.msra.mxu0 %v1139
    %1641 = vmatpush.bf16.msra.mxu0 %v1137
    %1642 = vmatpush.bf16.msra.mxu0 %v1135
    %1643 = vmatpush.bf16.msra.mxu0 %v1133
    %1644 = vmatpush.bf16.msra.mxu0 %v1131
    %1645 = vmatpush.bf16.msra.mxu0 %v1129
    %1646 = vmatpush.bf16.msra.mxu0 %v1127
    %1647 = vmatmul.bf16.gmra.mxu0 %v327
    %v1648 = vpop.f32.mrf.mxu0
    %v1649 = vadd.f32 %v299, %v1648
    %v1650 = vpop.f32.mrf.mxu0
    %1651 = vdwg.mxu0
    %1652 = vmatpush.bf16.msra.mxu0 %v1157
    %1653 = vmatpush.bf16.msra.mxu0 %v1155
    %1654 = vmatpush.bf16.msra.mxu0 %v1153
    %1655 = vmatpush.bf16.msra.mxu0 %v1151
    %1656 = vmatpush.bf16.msra.mxu0 %v1149
    %1657 = vmatpush.bf16.msra.mxu0 %v1147
    %1658 = vmatpush.bf16.msra.mxu0 %v1145
    %1659 = vmatpush.bf16.msra.mxu0 %v1143
    %1660 = vmatmul.bf16.gmra.mxu0 %v328
    %v1661 = vpop.f32.mrf.mxu0
    %v1662 = vadd.f32 %v1649, %v1661
    %v1663 = vpop.f32.mrf.mxu0
    %1664 = vdwg.mxu0
    %1665 = vmatpush.bf16.msra.mxu0 %v1173
    %1666 = vmatpush.bf16.msra.mxu0 %v1171
    %1667 = vmatpush.bf16.msra.mxu0 %v1169
    %1668 = vmatpush.bf16.msra.mxu0 %v1167
    %1669 = vmatpush.bf16.msra.mxu0 %v1165
    %1670 = vmatpush.bf16.msra.mxu0 %v1163
    %1671 = vmatpush.bf16.msra.mxu0 %v1161
    %1672 = vmatpush.bf16.msra.mxu0 %v1159
    %1673 = vmatmul.bf16.gmra.mxu0 %v329
    %v1674 = vpop.f32.mrf.mxu0
    %v1675 = vadd.f32 %v1662, %v1674
    %v1676 = vpop.f32.mrf.mxu0
    %1677 = vdwg.mxu0
    %1678 = vmatpush.bf16.msra.mxu0 %v1189
    %1679 = vmatpush.bf16.msra.mxu0 %v1187
    %1680 = vmatpush.bf16.msra.mxu0 %v1185
    %1681 = vmatpush.bf16.msra.mxu0 %v1183
    %1682 = vmatpush.bf16.msra.mxu0 %v1181
    %1683 = vmatpush.bf16.msra.mxu0 %v1179
    %1684 = vmatpush.bf16.msra.mxu0 %v1177
    %1685 = vmatpush.bf16.msra.mxu0 %v1175
    %1686 = vmatmul.bf16.gmra.mxu0 %v330
    %v1687 = vpop.f32.mrf.mxu0
    %v1688 = vadd.f32 %v1675, %v1687
    %v1689 = vpop.f32.mrf.mxu0
    %1690 = vdwg.mxu0
    %1691 = vmatpush.bf16.msra.mxu0 %v1205
    %1692 = vmatpush.bf16.msra.mxu0 %v1203
    %1693 = vmatpush.bf16.msra.mxu0 %v1201
    %1694 = vmatpush.bf16.msra.mxu0 %v1199
    %1695 = vmatpush.bf16.msra.mxu0 %v1197
    %1696 = vmatpush.bf16.msra.mxu0 %v1195
    %1697 = vmatpush.bf16.msra.mxu0 %v1193
    %1698 = vmatpush.bf16.msra.mxu0 %v1191
    %1699 = vmatmul.bf16.gmra.mxu0 %v331
    %v1700 = vpop.f32.mrf.mxu0
    %v1701 = vadd.f32 %v1688, %v1700
    %v1702 = vpop.f32.mrf.mxu0
    %1703 = vdwg.mxu0
    %1704 = vmatpush.bf16.msra.mxu0 %v1221
    %1705 = vmatpush.bf16.msra.mxu0 %v1219
    %1706 = vmatpush.bf16.msra.mxu0 %v1217
    %1707 = vmatpush.bf16.msra.mxu0 %v1215
    %1708 = vmatpush.bf16.msra.mxu0 %v1213
    %1709 = vmatpush.bf16.msra.mxu0 %v1211
    %1710 = vmatpush.bf16.msra.mxu0 %v1209
    %1711 = vmatpush.bf16.msra.mxu0 %v1207
    %1712 = vmatmul.bf16.gmra.mxu0 %v332
    %v1713 = vpop.f32.mrf.mxu0
    %v1714 = vadd.f32 %v1701, %v1713
    %v1715 = vpop.f32.mrf.mxu0
    %1716 = vdwg.mxu0
    %1717 = vmatpush.bf16.msra.mxu0 %v1237
    %1718 = vmatpush.bf16.msra.mxu0 %v1235
    %1719 = vmatpush.bf16.msra.mxu0 %v1233
    %1720 = vmatpush.bf16.msra.mxu0 %v1231
    %1721 = vmatpush.bf16.msra.mxu0 %v1229
    %1722 = vmatpush.bf16.msra.mxu0 %v1227
    %1723 = vmatpush.bf16.msra.mxu0 %v1225
    %1724 = vmatpush.bf16.msra.mxu0 %v1223
    %1725 = vmatmul.bf16.gmra.mxu0 %v333
    %v1726 = vpop.f32.mrf.mxu0
    %v1727 = vadd.f32 %v1714, %v1726
    %v1728 = vpop.f32.mrf.mxu0
    %1729 = vdwg.mxu0
    %1730 = vmatpush.bf16.msra.mxu0 %v1253
    %1731 = vmatpush.bf16.msra.mxu0 %v1251
    %1732 = vmatpush.bf16.msra.mxu0 %v1249
    %1733 = vmatpush.bf16.msra.mxu0 %v1247
    %1734 = vmatpush.bf16.msra.mxu0 %v1245
    %1735 = vmatpush.bf16.msra.mxu0 %v1243
    %1736 = vmatpush.bf16.msra.mxu0 %v1241
    %1737 = vmatpush.bf16.msra.mxu0 %v1239
    %1738 = vmatmul.bf16.gmra.mxu0 %v334
    %v1739 = vpop.f32.mrf.mxu0
    %v1740 = vadd.f32 %v1727, %v1739
    %v1741 = vpop.f32.mrf.mxu0
    %1742 = vdwg.mxu0
    %1743 = vmatpush.bf16.msra.mxu0 %v1269
    %1744 = vmatpush.bf16.msra.mxu0 %v1267
    %1745 = vmatpush.bf16.msra.mxu0 %v1265
    %1746 = vmatpush.bf16.msra.mxu0 %v1263
    %1747 = vmatpush.bf16.msra.mxu0 %v1261
    %1748 = vmatpush.bf16.msra.mxu0 %v1259
    %1749 = vmatpush.bf16.msra.mxu0 %v1257
    %1750 = vmatpush.bf16.msra.mxu0 %v1255
    %1751 = vmatmul.bf16.gmra.mxu0 %v335
    %v1752 = vpop.f32.mrf.mxu0
    %v1753 = vadd.f32 %v1740, %v1752
    %v1754 = vpop.f32.mrf.mxu0
    %1755 = vdwg.mxu0
    %1756 = vmatpush.bf16.msra.mxu0 %v1285
    %1757 = vmatpush.bf16.msra.mxu0 %v1283
    %1758 = vmatpush.bf16.msra.mxu0 %v1281
    %1759 = vmatpush.bf16.msra.mxu0 %v1279
    %1760 = vmatpush.bf16.msra.mxu0 %v1277
    %1761 = vmatpush.bf16.msra.mxu0 %v1275
    %1762 = vmatpush.bf16.msra.mxu0 %v1273
    %1763 = vmatpush.bf16.msra.mxu0 %v1271
    %1764 = vmatmul.bf16.gmra.mxu0 %v336
    %v1765 = vpop.f32.mrf.mxu0
    %v1766 = vadd.f32 %v1753, %v1765
    %v1767 = vpop.f32.mrf.mxu0
    %1768 = vdwg.mxu0
    %1769 = vmatpush.bf16.msra.mxu0 %v1301
    %1770 = vmatpush.bf16.msra.mxu0 %v1299
    %1771 = vmatpush.bf16.msra.mxu0 %v1297
    %1772 = vmatpush.bf16.msra.mxu0 %v1295
    %1773 = vmatpush.bf16.msra.mxu0 %v1293
    %1774 = vmatpush.bf16.msra.mxu0 %v1291
    %1775 = vmatpush.bf16.msra.mxu0 %v1289
    %1776 = vmatpush.bf16.msra.mxu0 %v1287
    %1777 = vmatmul.bf16.gmra.mxu0 %v337
    %v1778 = vpop.f32.mrf.mxu0
    %v1779 = vadd.f32 %v1766, %v1778
    %v1780 = vpop.f32.mrf.mxu0
    %1781 = vdwg.mxu0
    %1782 = vmatpush.bf16.msra.mxu0 %v1317
    %1783 = vmatpush.bf16.msra.mxu0 %v1315
    %1784 = vmatpush.bf16.msra.mxu0 %v1313
    %1785 = vmatpush.bf16.msra.mxu0 %v1311
    %1786 = vmatpush.bf16.msra.mxu0 %v1309
    %1787 = vmatpush.bf16.msra.mxu0 %v1307
    %1788 = vmatpush.bf16.msra.mxu0 %v1305
    %1789 = vmatpush.bf16.msra.mxu0 %v1303
    %1790 = vmatmul.bf16.gmra.mxu0 %v338
    %v1791 = vpop.f32.mrf.mxu0
    %v1792 = vadd.f32 %v1779, %v1791
    %v1793 = vpop.f32.mrf.mxu0
    %1794 = vdwg.mxu0
    %1795 = vmatpush.bf16.msra.mxu0 %v1333
    %1796 = vmatpush.bf16.msra.mxu0 %v1331
    %1797 = vmatpush.bf16.msra.mxu0 %v1329
    %1798 = vmatpush.bf16.msra.mxu0 %v1327
    %1799 = vmatpush.bf16.msra.mxu0 %v1325
    %1800 = vmatpush.bf16.msra.mxu0 %v1323
    %1801 = vmatpush.bf16.msra.mxu0 %v1321
    %1802 = vmatpush.bf16.msra.mxu0 %v1319
    %1803 = vmatmul.bf16.gmra.mxu0 %v339
    %v1804 = vpop.f32.mrf.mxu0
    %v1805 = vadd.f32 %v1792, %v1804
    %v1806 = vpop.f32.mrf.mxu0
    %1807 = vdwg.mxu0
    %1808 = vmatpush.bf16.msra.mxu0 %v1349
    %1809 = vmatpush.bf16.msra.mxu0 %v1347
    %1810 = vmatpush.bf16.msra.mxu0 %v1345
    %1811 = vmatpush.bf16.msra.mxu0 %v1343
    %1812 = vmatpush.bf16.msra.mxu0 %v1341
    %1813 = vmatpush.bf16.msra.mxu0 %v1339
    %1814 = vmatpush.bf16.msra.mxu0 %v1337
    %1815 = vmatpush.bf16.msra.mxu0 %v1335
    %1816 = vmatmul.bf16.gmra.mxu0 %v340
    %v1817 = vpop.f32.mrf.mxu0
    %v1818 = vadd.f32 %v1805, %v1817
    %v1819 = vpop.f32.mrf.mxu0
    %1820 = vdwg.mxu0
    %1821 = vmatpush.bf16.msra.mxu0 %v1365
    %1822 = vmatpush.bf16.msra.mxu0 %v1363
    %1823 = vmatpush.bf16.msra.mxu0 %v1361
    %1824 = vmatpush.bf16.msra.mxu0 %v1359
    %1825 = vmatpush.bf16.msra.mxu0 %v1357
    %1826 = vmatpush.bf16.msra.mxu0 %v1355
    %1827 = vmatpush.bf16.msra.mxu0 %v1353
    %1828 = vmatpush.bf16.msra.mxu0 %v1351
    %1829 = vmatmul.bf16.gmra.mxu0 %v341
    %v1830 = vpop.f32.mrf.mxu0
    %v1831 = vadd.f32 %v1818, %v1830
    %v1832 = vpop.f32.mrf.mxu0
    %1833 = vdwg.mxu0
    %1834 = vmatpush.bf16.msra.mxu0 %v1381
    %1835 = vmatpush.bf16.msra.mxu0 %v1379
    %1836 = vmatpush.bf16.msra.mxu0 %v1377
    %1837 = vmatpush.bf16.msra.mxu0 %v1375
    %1838 = vmatpush.bf16.msra.mxu0 %v1373
    %1839 = vmatpush.bf16.msra.mxu0 %v1371
    %1840 = vmatpush.bf16.msra.mxu0 %v1369
    %1841 = vmatpush.bf16.msra.mxu0 %v1367
    %1842 = vmatmul.bf16.gmra.mxu0 %v342
    %v1843 = vpop.f32.mrf.mxu0
    %v1844 = vadd.f32 %v1831, %v1843
    %v1845 = vpop.f32.mrf.mxu0
    %1846 = vdwg.mxu0
    %1847 = vmatpush.bf16.msra.mxu0 %v1142
    %1848 = vmatpush.bf16.msra.mxu0 %v1140
    %1849 = vmatpush.bf16.msra.mxu0 %v1138
    %1850 = vmatpush.bf16.msra.mxu0 %v1136
    %1851 = vmatpush.bf16.msra.mxu0 %v1134
    %1852 = vmatpush.bf16.msra.mxu0 %v1132
    %1853 = vmatpush.bf16.msra.mxu0 %v1130
    %1854 = vmatpush.bf16.msra.mxu0 %v1128
    %1855 = vmatmul.bf16.gmra.mxu0 %v327
    %v1856 = vpop.f32.mrf.mxu0
    %v1857 = vadd.f32 %v300, %v1856
    %v1858 = vpop.f32.mrf.mxu0
    %1859 = vdwg.mxu0
    %1860 = vmatpush.bf16.msra.mxu0 %v1158
    %1861 = vmatpush.bf16.msra.mxu0 %v1156
    %1862 = vmatpush.bf16.msra.mxu0 %v1154
    %1863 = vmatpush.bf16.msra.mxu0 %v1152
    %1864 = vmatpush.bf16.msra.mxu0 %v1150
    %1865 = vmatpush.bf16.msra.mxu0 %v1148
    %1866 = vmatpush.bf16.msra.mxu0 %v1146
    %1867 = vmatpush.bf16.msra.mxu0 %v1144
    %1868 = vmatmul.bf16.gmra.mxu0 %v328
    %v1869 = vpop.f32.mrf.mxu0
    %v1870 = vadd.f32 %v1857, %v1869
    %v1871 = vpop.f32.mrf.mxu0
    %1872 = vdwg.mxu0
    %1873 = vmatpush.bf16.msra.mxu0 %v1174
    %1874 = vmatpush.bf16.msra.mxu0 %v1172
    %1875 = vmatpush.bf16.msra.mxu0 %v1170
    %1876 = vmatpush.bf16.msra.mxu0 %v1168
    %1877 = vmatpush.bf16.msra.mxu0 %v1166
    %1878 = vmatpush.bf16.msra.mxu0 %v1164
    %1879 = vmatpush.bf16.msra.mxu0 %v1162
    %1880 = vmatpush.bf16.msra.mxu0 %v1160
    %1881 = vmatmul.bf16.gmra.mxu0 %v329
    %v1882 = vpop.f32.mrf.mxu0
    %v1883 = vadd.f32 %v1870, %v1882
    %v1884 = vpop.f32.mrf.mxu0
    %1885 = vdwg.mxu0
    %1886 = vmatpush.bf16.msra.mxu0 %v1190
    %1887 = vmatpush.bf16.msra.mxu0 %v1188
    %1888 = vmatpush.bf16.msra.mxu0 %v1186
    %1889 = vmatpush.bf16.msra.mxu0 %v1184
    %1890 = vmatpush.bf16.msra.mxu0 %v1182
    %1891 = vmatpush.bf16.msra.mxu0 %v1180
    %1892 = vmatpush.bf16.msra.mxu0 %v1178
    %1893 = vmatpush.bf16.msra.mxu0 %v1176
    %1894 = vmatmul.bf16.gmra.mxu0 %v330
    %v1895 = vpop.f32.mrf.mxu0
    %v1896 = vadd.f32 %v1883, %v1895
    %v1897 = vpop.f32.mrf.mxu0
    %1898 = vdwg.mxu0
    %1899 = vmatpush.bf16.msra.mxu0 %v1206
    %1900 = vmatpush.bf16.msra.mxu0 %v1204
    %1901 = vmatpush.bf16.msra.mxu0 %v1202
    %1902 = vmatpush.bf16.msra.mxu0 %v1200
    %1903 = vmatpush.bf16.msra.mxu0 %v1198
    %1904 = vmatpush.bf16.msra.mxu0 %v1196
    %1905 = vmatpush.bf16.msra.mxu0 %v1194
    %1906 = vmatpush.bf16.msra.mxu0 %v1192
    %1907 = vmatmul.bf16.gmra.mxu0 %v331
    %v1908 = vpop.f32.mrf.mxu0
    %v1909 = vadd.f32 %v1896, %v1908
    %v1910 = vpop.f32.mrf.mxu0
    %1911 = vdwg.mxu0
    %1912 = vmatpush.bf16.msra.mxu0 %v1222
    %1913 = vmatpush.bf16.msra.mxu0 %v1220
    %1914 = vmatpush.bf16.msra.mxu0 %v1218
    %1915 = vmatpush.bf16.msra.mxu0 %v1216
    %1916 = vmatpush.bf16.msra.mxu0 %v1214
    %1917 = vmatpush.bf16.msra.mxu0 %v1212
    %1918 = vmatpush.bf16.msra.mxu0 %v1210
    %1919 = vmatpush.bf16.msra.mxu0 %v1208
    %1920 = vmatmul.bf16.gmra.mxu0 %v332
    %v1921 = vpop.f32.mrf.mxu0
    %v1922 = vadd.f32 %v1909, %v1921
    %v1923 = vpop.f32.mrf.mxu0
    %1924 = vdwg.mxu0
    %1925 = vmatpush.bf16.msra.mxu0 %v1238
    %1926 = vmatpush.bf16.msra.mxu0 %v1236
    %1927 = vmatpush.bf16.msra.mxu0 %v1234
    %1928 = vmatpush.bf16.msra.mxu0 %v1232
    %1929 = vmatpush.bf16.msra.mxu0 %v1230
    %1930 = vmatpush.bf16.msra.mxu0 %v1228
    %1931 = vmatpush.bf16.msra.mxu0 %v1226
    %1932 = vmatpush.bf16.msra.mxu0 %v1224
    %1933 = vmatmul.bf16.gmra.mxu0 %v333
    %v1934 = vpop.f32.mrf.mxu0
    %v1935 = vadd.f32 %v1922, %v1934
    %v1936 = vpop.f32.mrf.mxu0
    %1937 = vdwg.mxu0
    %1938 = vmatpush.bf16.msra.mxu0 %v1254
    %1939 = vmatpush.bf16.msra.mxu0 %v1252
    %1940 = vmatpush.bf16.msra.mxu0 %v1250
    %1941 = vmatpush.bf16.msra.mxu0 %v1248
    %1942 = vmatpush.bf16.msra.mxu0 %v1246
    %1943 = vmatpush.bf16.msra.mxu0 %v1244
    %1944 = vmatpush.bf16.msra.mxu0 %v1242
    %1945 = vmatpush.bf16.msra.mxu0 %v1240
    %1946 = vmatmul.bf16.gmra.mxu0 %v334
    %v1947 = vpop.f32.mrf.mxu0
    %v1948 = vadd.f32 %v1935, %v1947
    %v1949 = vpop.f32.mrf.mxu0
    %1950 = vdwg.mxu0
    %1951 = vmatpush.bf16.msra.mxu0 %v1270
    %1952 = vmatpush.bf16.msra.mxu0 %v1268
    %1953 = vmatpush.bf16.msra.mxu0 %v1266
    %1954 = vmatpush.bf16.msra.mxu0 %v1264
    %1955 = vmatpush.bf16.msra.mxu0 %v1262
    %1956 = vmatpush.bf16.msra.mxu0 %v1260
    %1957 = vmatpush.bf16.msra.mxu0 %v1258
    %1958 = vmatpush.bf16.msra.mxu0 %v1256
    %1959 = vmatmul.bf16.gmra.mxu0 %v335
    %v1960 = vpop.f32.mrf.mxu0
    %v1961 = vadd.f32 %v1948, %v1960
    %v1962 = vpop.f32.mrf.mxu0
    %1963 = vdwg.mxu0
    %1964 = vmatpush.bf16.msra.mxu0 %v1286
    %1965 = vmatpush.bf16.msra.mxu0 %v1284
    %1966 = vmatpush.bf16.msra.mxu0 %v1282
    %1967 = vmatpush.bf16.msra.mxu0 %v1280
    %1968 = vmatpush.bf16.msra.mxu0 %v1278
    %1969 = vmatpush.bf16.msra.mxu0 %v1276
    %1970 = vmatpush.bf16.msra.mxu0 %v1274
    %1971 = vmatpush.bf16.msra.mxu0 %v1272
    %1972 = vmatmul.bf16.gmra.mxu0 %v336
    %v1973 = vpop.f32.mrf.mxu0
    %v1974 = vadd.f32 %v1961, %v1973
    %v1975 = vpop.f32.mrf.mxu0
    %1976 = vdwg.mxu0
    %1977 = vmatpush.bf16.msra.mxu0 %v1302
    %1978 = vmatpush.bf16.msra.mxu0 %v1300
    %1979 = vmatpush.bf16.msra.mxu0 %v1298
    %1980 = vmatpush.bf16.msra.mxu0 %v1296
    %1981 = vmatpush.bf16.msra.mxu0 %v1294
    %1982 = vmatpush.bf16.msra.mxu0 %v1292
    %1983 = vmatpush.bf16.msra.mxu0 %v1290
    %1984 = vmatpush.bf16.msra.mxu0 %v1288
    %1985 = vmatmul.bf16.gmra.mxu0 %v337
    %v1986 = vpop.f32.mrf.mxu0
    %v1987 = vadd.f32 %v1974, %v1986
    %v1988 = vpop.f32.mrf.mxu0
    %1989 = vdwg.mxu0
    %1990 = vmatpush.bf16.msra.mxu0 %v1318
    %1991 = vmatpush.bf16.msra.mxu0 %v1316
    %1992 = vmatpush.bf16.msra.mxu0 %v1314
    %1993 = vmatpush.bf16.msra.mxu0 %v1312
    %1994 = vmatpush.bf16.msra.mxu0 %v1310
    %1995 = vmatpush.bf16.msra.mxu0 %v1308
    %1996 = vmatpush.bf16.msra.mxu0 %v1306
    %1997 = vmatpush.bf16.msra.mxu0 %v1304
    %1998 = vmatmul.bf16.gmra.mxu0 %v338
    %v1999 = vpop.f32.mrf.mxu0
    %v2000 = vadd.f32 %v1987, %v1999
    %v2001 = vpop.f32.mrf.mxu0
    %2002 = vdwg.mxu0
    %2003 = vmatpush.bf16.msra.mxu0 %v1334
    %2004 = vmatpush.bf16.msra.mxu0 %v1332
    %2005 = vmatpush.bf16.msra.mxu0 %v1330
    %2006 = vmatpush.bf16.msra.mxu0 %v1328
    %2007 = vmatpush.bf16.msra.mxu0 %v1326
    %2008 = vmatpush.bf16.msra.mxu0 %v1324
    %2009 = vmatpush.bf16.msra.mxu0 %v1322
    %2010 = vmatpush.bf16.msra.mxu0 %v1320
    %2011 = vmatmul.bf16.gmra.mxu0 %v339
    %v2012 = vpop.f32.mrf.mxu0
    %v2013 = vadd.f32 %v2000, %v2012
    %v2014 = vpop.f32.mrf.mxu0
    %2015 = vdwg.mxu0
    %2016 = vmatpush.bf16.msra.mxu0 %v1350
    %2017 = vmatpush.bf16.msra.mxu0 %v1348
    %2018 = vmatpush.bf16.msra.mxu0 %v1346
    %2019 = vmatpush.bf16.msra.mxu0 %v1344
    %2020 = vmatpush.bf16.msra.mxu0 %v1342
    %2021 = vmatpush.bf16.msra.mxu0 %v1340
    %2022 = vmatpush.bf16.msra.mxu0 %v1338
    %2023 = vmatpush.bf16.msra.mxu0 %v1336
    %2024 = vmatmul.bf16.gmra.mxu0 %v340
    %v2025 = vpop.f32.mrf.mxu0
    %v2026 = vadd.f32 %v2013, %v2025
    %v2027 = vpop.f32.mrf.mxu0
    %2028 = vdwg.mxu0
    %2029 = vmatpush.bf16.msra.mxu0 %v1366
    %2030 = vmatpush.bf16.msra.mxu0 %v1364
    %2031 = vmatpush.bf16.msra.mxu0 %v1362
    %2032 = vmatpush.bf16.msra.mxu0 %v1360
    %2033 = vmatpush.bf16.msra.mxu0 %v1358
    %2034 = vmatpush.bf16.msra.mxu0 %v1356
    %2035 = vmatpush.bf16.msra.mxu0 %v1354
    %2036 = vmatpush.bf16.msra.mxu0 %v1352
    %2037 = vmatmul.bf16.gmra.mxu0 %v341
    %v2038 = vpop.f32.mrf.mxu0
    %v2039 = vadd.f32 %v2026, %v2038
    %v2040 = vpop.f32.mrf.mxu0
    %2041 = vdwg.mxu0
    %2042 = vmatpush.bf16.msra.mxu0 %v1382
    %2043 = vmatpush.bf16.msra.mxu0 %v1380
    %2044 = vmatpush.bf16.msra.mxu0 %v1378
    %2045 = vmatpush.bf16.msra.mxu0 %v1376
    %2046 = vmatpush.bf16.msra.mxu0 %v1374
    %2047 = vmatpush.bf16.msra.mxu0 %v1372
    %2048 = vmatpush.bf16.msra.mxu0 %v1370
    %2049 = vmatpush.bf16.msra.mxu0 %v1368
    %2050 = vmatmul.bf16.gmra.mxu0 %v342
    %v2051 = vpop.f32.mrf.mxu0
    %v2052 = vadd.f32 %v2039, %v2051
    %v2053 = vpop.f32.mrf.mxu0
    %2054 = vdwg.mxu0
    %v2055 = vmax.f32 %v1844, 0.0
    %v2056 = vmax.f32 %v2052, 0.0
    %v2057 = vmax.f32 %v2055, -1.0
    %v2058 = vmax.f32 %v2056, -1.0
    %v2059 = vmin.f32 %v2057, 1.0
    %v2060 = vmin.f32 %v2058, 1.0
    %v2061 = vsub.f32 %v2059, -1.0
    %v2062 = vsub.f32 %v2060, -1.0
    %v2063 = vmul.f32 %v2061, 10.0
    %v2064 = vmul.f32 %v2062, 10.0
    %v2065 = vld [vmem:[%s3 + $0x10] sm:$0xff]
    %v2066 = vld [vmem:[%s3 + $0x18] sm:$0xff]
    %v2067 = vld [vmem:[%s3 + $0x20] sm:$0x1f]
    %v2068 = vld [vmem:[%s3 + $0x28] sm:$0x1f]
    %v2069 = vsub.f32 %v2063, 10.0
    %v2070 = vsub.f32 %v2064, 10.0
    %v2071 = vand.u32 2147483647, %v2069
    %v2072 = vand.u32 2147483647, %v2070
    %v2073 = vsub.f32 1.0, %v2071
    %v2074 = vsub.f32 1.0, %v2072
    %v2075 = vmax.f32 %v2073, 0.0
    %v2076 = vmax.f32 %v2074, 0.0
    %v2077 = vperm.slane %v2065, 2
    %v2078 = vperm.slane %v2066, 2
    %v2079 = vmul.f32 %v2075, %v2077
    %v2080 = vmul.f32 %v2076, %v2078
    %v2081 = vadd.f32 %v2079, 0.0
    %v2082 = vadd.f32 %v2080, 0.0
    %v2083 = vsub.f32 %v2063, 11.0
    %v2084 = vsub.f32 %v2064, 11.0
    %v2085 = vand.u32 2147483647, %v2083
    %v2086 = vand.u32 2147483647, %v2084
    %v2087 = vsub.f32 1.0, %v2085
    %v2088 = vsub.f32 1.0, %v2086
    %v2089 = vmax.f32 %v2087, 0.0
    %v2090 = vmax.f32 %v2088, 0.0
    %v2091 = vperm.slane %v2065, 3
    %v2092 = vperm.slane %v2066, 3
    %v2093 = vmul.f32 %v2089, %v2091
    %v2094 = vmul.f32 %v2090, %v2092
    %v2095 = vadd.f32 %v2081, %v2093
    %v2096 = vadd.f32 %v2082, %v2094
    %v2097 = vsub.f32 %v2063, 12.0
    %v2098 = vsub.f32 %v2064, 12.0
    %v2099 = vand.u32 2147483647, %v2097
    %v2100 = vand.u32 2147483647, %v2098
    %v2101 = vsub.f32 1.0, %v2099
    %v2102 = vsub.f32 1.0, %v2100
    %v2103 = vmax.f32 %v2101, 0.0
    %v2104 = vmax.f32 %v2102, 0.0
    %v2105 = vperm.slane %v2065, 4
    %v2106 = vperm.slane %v2066, 4
    %v2107 = vmul.f32 %v2103, %v2105
    %v2108 = vmul.f32 %v2104, %v2106
    %v2109 = vadd.f32 %v2095, %v2107
    %v2110 = vadd.f32 %v2096, %v2108
    %v2111 = vsub.f32 %v2063, 13.0
    %v2112 = vsub.f32 %v2064, 13.0
    %v2113 = vand.u32 2147483647, %v2111
    %v2114 = vand.u32 2147483647, %v2112
    %v2115 = vsub.f32 1.0, %v2113
    %v2116 = vsub.f32 1.0, %v2114
    %v2117 = vmax.f32 %v2115, 0.0
    %v2118 = vmax.f32 %v2116, 0.0
    %v2119 = vperm.slane %v2065, 5
    %v2120 = vperm.slane %v2066, 5
    %v2121 = vmul.f32 %v2117, %v2119
    %v2122 = vmul.f32 %v2118, %v2120
    %v2123 = vadd.f32 %v2109, %v2121
    %v2124 = vadd.f32 %v2110, %v2122
    %v2125 = vsub.f32 %v2063, 14.0
    %v2126 = vsub.f32 %v2064, 14.0
    %v2127 = vand.u32 2147483647, %v2125
    %v2128 = vand.u32 2147483647, %v2126
    %v2129 = vsub.f32 1.0, %v2127
    %v2130 = vsub.f32 1.0, %v2128
    %v2131 = vmax.f32 %v2129, 0.0
    %v2132 = vmax.f32 %v2130, 0.0
    %v2133 = vperm.slane %v2065, 6
    %v2134 = vperm.slane %v2066, 6
    %v2135 = vmul.f32 %v2131, %v2133
    %v2136 = vmul.f32 %v2132, %v2134
    %v2137 = vadd.f32 %v2123, %v2135
    %v2138 = vadd.f32 %v2124, %v2136
    %v2139 = vsub.f32 %v2063, 15.0
    %v2140 = vsub.f32 %v2064, 15.0
    %v2141 = vand.u32 2147483647, %v2139
    %v2142 = vand.u32 2147483647, %v2140
    %v2143 = vsub.f32 1.0, %v2141
    %v2144 = vsub.f32 1.0, %v2142
    %v2145 = vmax.f32 %v2143, 0.0
    %v2146 = vmax.f32 %v2144, 0.0
    %v2147 = vperm.slane %v2065, 7
    %v2148 = vperm.slane %v2066, 7
    %v2149 = vmul.f32 %v2145, %v2147
    %v2150 = vmul.f32 %v2146, %v2148
    %v2151 = vadd.f32 %v2137, %v2149
    %v2152 = vadd.f32 %v2138, %v2150
    %v2153 = vsub.f32 %v2063, 16.0
    %v2154 = vsub.f32 %v2064, 16.0
    %v2155 = vand.u32 2147483647, %v2153
    %v2156 = vand.u32 2147483647, %v2154
    %v2157 = vsub.f32 1.0, %v2155
    %v2158 = vsub.f32 1.0, %v2156
    %v2159 = vmax.f32 %v2157, 0.0
    %v2160 = vmax.f32 %v2158, 0.0
    %v2161 = vperm.slane %v2067, 0
    %v2162 = vperm.slane %v2068, 0
    %v2163 = vmul.f32 %v2159, %v2161
    %v2164 = vmul.f32 %v2160, %v2162
    %v2165 = vadd.f32 %v2151, %v2163
    %v2166 = vadd.f32 %v2152, %v2164
    %v2167 = vsub.f32 %v2063, 17.0
    %v2168 = vsub.f32 %v2064, 17.0
    %v2169 = vand.u32 2147483647, %v2167
    %v2170 = vand.u32 2147483647, %v2168
    %v2171 = vsub.f32 1.0, %v2169
    %v2172 = vsub.f32 1.0, %v2170
    %v2173 = vmax.f32 %v2171, 0.0
    %v2174 = vmax.f32 %v2172, 0.0
    %v2175 = vperm.slane %v2067, 1
    %v2176 = vperm.slane %v2068, 1
    %v2177 = vmul.f32 %v2173, %v2175
    %v2178 = vmul.f32 %v2174, %v2176
    %v2179 = vadd.f32 %v2165, %v2177
    %v2180 = vadd.f32 %v2166, %v2178
    %v2181 = vsub.f32 %v2063, 18.0
    %v2182 = vsub.f32 %v2064, 18.0
    %v2183 = vand.u32 2147483647, %v2181
    %v2184 = vand.u32 2147483647, %v2182
    %v2185 = vsub.f32 1.0, %v2183
    %v2186 = vsub.f32 1.0, %v2184
    %v2187 = vmax.f32 %v2185, 0.0
    %v2188 = vmax.f32 %v2186, 0.0
    %v2189 = vperm.slane %v2067, 2
    %v2190 = vperm.slane %v2068, 2
    %v2191 = vmul.f32 %v2187, %v2189
    %v2192 = vmul.f32 %v2188, %v2190
    %v2193 = vadd.f32 %v2179, %v2191
    %v2194 = vadd.f32 %v2180, %v2192
    %v2195 = vsub.f32 %v2063, 19.0
    %v2196 = vsub.f32 %v2064, 19.0
    %v2197 = vand.u32 2147483647, %v2195
    %v2198 = vand.u32 2147483647, %v2196
    %v2199 = vsub.f32 1.0, %v2197
    %v2200 = vsub.f32 1.0, %v2198
    %v2201 = vmax.f32 %v2199, 0.0
    %v2202 = vmax.f32 %v2200, 0.0
    %v2203 = vperm.slane %v2067, 3
    %v2204 = vperm.slane %v2068, 3
    %v2205 = vmul.f32 %v2201, %v2203
    %v2206 = vmul.f32 %v2202, %v2204
    %v2207 = vadd.f32 %v2193, %v2205
    %v2208 = vadd.f32 %v2194, %v2206
    %v2209 = vsub.f32 %v2063, 20.0
    %v2210 = vsub.f32 %v2064, 20.0
    %v2211 = vand.u32 2147483647, %v2209
    %v2212 = vand.u32 2147483647, %v2210
    %v2213 = vsub.f32 1.0, %v2211
    %v2214 = vsub.f32 1.0, %v2212
    %v2215 = vmax.f32 %v2213, 0.0
    %v2216 = vmax.f32 %v2214, 0.0
    %v2217 = vperm.slane %v2067, 4
    %v2218 = vperm.slane %v2068, 4
    %v2219 = vmul.f32 %v2215, %v2217
    %v2220 = vmul.f32 %v2216, %v2218
    %v2221 = vadd.f32 %v2207, %v2219
    %v2222 = vadd.f32 %v2208, %v2220
    %vm2223 = vcmp.gt.f32.partialorder %v2221, 0.0
    %vm2224 = vcmp.gt.f32.partialorder %v2222, 0.0
    %v2225 = vmul.f32 %v2221, 0.01
    %v2226 = vmul.f32 %v2222, 0.01
    %v2227 = vsel %vm2223, %v2221, %v2225
    %v2228 = vsel %vm2224, %v2222, %v2226
    %2229 = vst [vmem:[%s4] sm:$0xff] %v2227
    %2230 = vst [vmem:[%s4 + $0x8] sm:$0xff] %v2228
    // Predicated region
    $region22: #{dense_forward.1} parent=1 // pred_check
      _
    $region23: #{dense_forward.1} parent=1 // pred_check_branch
      %2232 = sbr.rel (0) target = $region25
    $region24: #{dense_forward.1} parent=1 // pred_region
      _
    $region25: #{dense_forward.1} parent=1 // pred_fallthru
      _
    // Predicated region
    $region26: #{dense_forward.1} parent=1 // pred_check
      _
    $region27: #{dense_forward.1} parent=1 // pred_check_branch
      %2234 = sbr.rel (0) target = $region29
    $region28: #{dense_forward.1} parent=1 // pred_region
      _
    $region29: #{dense_forward.1} parent=1 // pred_fallthru
      _
    %2235 = vsyncpa [#allocation3], 1

</llo_original>
